<compile_context>
chip_gen: v7x
topology: tpu7x:2x2x1
jax: 0.10.0
libtpu: 0.0.40
codegen_flags: <defaults>
</compile_context>

<pallas_src>
import math
from functools import partial

import numpy as np
import jax
import jax.numpy as jnp
from jax import lax
from jax.experimental import pallas as pl
from jax.experimental.pallas import tpu as pltpu

# ---------------- small synthetic Phi-2 style config ----------------
BATCH = 2
SEQ = 8
HIDDEN = 64
NUM_HEADS = 4
HEAD_DIM = HIDDEN // NUM_HEADS                       # 16
INTERMEDIATE = 4 * HIDDEN                            # 256
PARTIAL_ROTARY_FACTOR = 0.5                          # phi-2 uses 0.4; 0.5 keeps rotary_dim even here
ROTARY_DIM = int(HEAD_DIM * PARTIAL_ROTARY_FACTOR)   # 8
ROPE_THETA = 10000.0
LN_EPS = 1e-5


# ---------------- host-side precompute (done once per model / seq length) ----------------
def rotary_perm_matrix():
    """(H, H) matrix P such that (x @ P)[:, j] = x[:, perm(j)] where perm rotates each head's
    rotary sub-block by ROTARY_DIM//2 (the rotate_half source index)."""
    P = np.zeros((HIDDEN, HIDDEN), np.float32)
    half = ROTARY_DIM // 2
    for hd in range(NUM_HEADS):
        base = hd * HEAD_DIM
        for j in range(ROTARY_DIM):
            P[base + (j + half) % ROTARY_DIM, base + j] = 1.0
    return jnp.asarray(P)


def rope_tables(seq_len):
    """Full-width (S, H) cos and signed-sin tables: cos=1 / sin=0 on pass-through features,
    sin negated on the first rotary half so RoPE becomes x*cos + (x@P)*sin."""
    half = ROTARY_DIM // 2
    inv_freq = 1.0 / (ROPE_THETA ** (np.arange(0, ROTARY_DIM, 2, dtype=np.float32) / ROTARY_DIM))
    t = np.arange(seq_len, dtype=np.float32)
    freqs = np.outer(t, inv_freq)                              # (S, R/2)
    emb = np.concatenate([freqs, freqs], axis=-1)              # (S, R)
    cos, sin = np.cos(emb), np.sin(emb)
    pass_w = HEAD_DIM - ROTARY_DIM
    cos_head = np.concatenate([cos, np.ones((seq_len, pass_w), np.float32)], axis=-1)
    sin_head = np.concatenate([-sin[:, :half], sin[:, half:],
                               np.zeros((seq_len, pass_w), np.float32)], axis=-1)
    cos_full = np.tile(cos_head, (1, NUM_HEADS)).astype(np.float32)   # (S, H)
    sin_full = np.tile(sin_head, (1, NUM_HEADS)).astype(np.float32)   # (S, H)
    return jnp.asarray(cos_full), jnp.asarray(sin_full)


def causal_mask_add(seq_len):
    """(S, S) additive causal mask (0 on/below diagonal, large negative above)."""
    idx = np.arange(seq_len)
    m = np.where(idx[None, :] <= idx[:, None], 0.0, -1e30).astype(np.float32)
    return jnp.asarray(m)


def pack_params(params, matmul_dtype=jnp.float32):
    """Fold softmax scale + rotate_half permutation into one [q|qP|k|kP|v] weight; reshape
    biases lane-wise; optionally store matmul weights in bf16 (v6e/v7x MXU path)."""
    P = rotary_perm_matrix()
    scale = 1.0 / math.sqrt(HEAD_DIM)
    q_w = params["q_w"] * scale
    q_b = params["q_b"] * scale
    qkv_w = jnp.concatenate(
        [q_w, q_w @ P, params["k_w"], params["k_w"] @ P, params["v_w"]], axis=1)   # (H, 5H)
    qkv_b = jnp.concatenate(
        [q_b, q_b @ P, params["k_b"], params["k_b"] @ P, params["v_b"]])            # (5H,)
    f32 = jnp.float32
    return {
        "ln_w": params["ln_w"].reshape(1, -1).astype(f32),
        "ln_b": params["ln_b"].reshape(1, -1).astype(f32),
        "qkv_w": qkv_w.astype(matmul_dtype),
        "qkv_b": qkv_b.reshape(1, -1).astype(f32),
        "dense_w": params["dense_w"].astype(matmul_dtype),
        "dense_b": params["dense_b"].reshape(1, -1).astype(f32),
        "fc1_w": params["fc1_w"].astype(matmul_dtype),
        "fc1_b": params["fc1_b"].reshape(1, -1).astype(f32),
        "fc2_w": params["fc2_w"].astype(matmul_dtype),
        "fc2_b": params["fc2_b"].reshape(1, -1).astype(f32),
    }


# ---------------- the single fused Pallas kernel ----------------
def _phi2_block_kernel(x_ref, ln_w_ref, ln_b_ref, qkv_w_ref, qkv_b_ref,
                       dense_w_ref, dense_b_ref, fc1_w_ref, fc1_b_ref,
                       fc2_w_ref, fc2_b_ref, cos_ref, sin_ref, mask_ref,
                       o_ref, *, batch, seq, use_attention, use_mlp, matmul_dtype):
    f32 = jnp.float32
    x = x_ref[...]                                           # (B*S, H) residual, f32

    # ---- input LayerNorm (f32 statistics), all rows at once ----
    mean = jnp.mean(x, axis=-1, keepdims=True)
    var = jnp.mean(jnp.square(x - mean), axis=-1, keepdims=True)
    h = (x - mean) * lax.rsqrt(var + LN_EPS) * ln_w_ref[...] + ln_b_ref[...]
    h_mm = h.astype(matmul_dtype)

    out = x                                                  # residual accumulator

    if use_attention:
        # fused [q | q@P | k | k@P | v] projection (softmax scale pre-folded into q columns),
        # one matmul over all B*S rows.
        qkv = jnp.dot(h_mm, qkv_w_ref[...], preferred_element_type=f32) + qkv_b_ref[...]
        cos = cos_ref[...]                                   # (B*S, H)
        sin = sin_ref[...]                                   # (B*S, H), signed, 0 on pass-through
        H_ = HIDDEN
        q = (qkv[:, 0 * H_:1 * H_] * cos + qkv[:, 1 * H_:2 * H_] * sin).astype(matmul_dtype)
        k = (qkv[:, 2 * H_:3 * H_] * cos + qkv[:, 3 * H_:4 * H_] * sin).astype(matmul_dtype)
        v = qkv[:, 4 * H_:5 * H_].astype(matmul_dtype)
        mask_add = mask_ref[...]                             # (S, S) causal additive mask

        batch_outs = []
        for b in range(batch):                               # unrolled; everything stays in VMEM
            r0 = b * seq
            head_outs = []
            for hd in range(NUM_HEADS):
                lo, hi = hd * HEAD_DIM, (hd + 1) * HEAD_DIM
                q_h = q[r0:r0 + seq, lo:hi]
                k_h = k[r0:r0 + seq, lo:hi]
                v_h = v[r0:r0 + seq, lo:hi]
                s = jnp.dot(q_h, k_h.T, preferred_element_type=f32) + mask_add
                s = s - jnp.max(s, axis=-1, keepdims=True)
                p = jnp.exp(s)
                p = p * pl.reciprocal(jnp.sum(p, axis=-1, keepdims=True), approx=True)
                head_outs.append(jnp.dot(p.astype(matmul_dtype), v_h,
                                         preferred_element_type=f32))
            batch_outs.append(jnp.concatenate(head_outs, axis=-1))      # (S, H)
        attn = jnp.concatenate(batch_outs, axis=0).astype(matmul_dtype)  # (B*S, H)
        # dense epilogue: bias + residual folded in
        out = out + jnp.dot(attn, dense_w_ref[...], preferred_element_type=f32) + dense_b_ref[...]

    if use_mlp:
        h1 = jnp.dot(h_mm, fc1_w_ref[...], preferred_element_type=f32) + fc1_b_ref[...]
        c = math.sqrt(2.0 / math.pi)                         # NewGELUActivation (tanh approx), f32
        h1 = 0.5 * h1 * (1.0 + jnp.tanh(c * (h1 + 0.044715 * h1 * h1 * h1)))
        out = out + jnp.dot(h1.astype(matmul_dtype), fc2_w_ref[...],
                            preferred_element_type=f32) + fc2_b_ref[...]

    o_ref[...] = out.astype(o_ref.dtype)


def phi2_block_forward(packed, x, use_attention=True, use_mlp=True):
    B, S, H = x.shape
    assert H == HIDDEN
    matmul_dtype = packed["qkv_w"].dtype
    cos, sin = rope_tables(S)
    cos = jnp.tile(cos, (B, 1))                              # (B*S, H)
    sin = jnp.tile(sin, (B, 1))                              # (B*S, H)
    mask_add = causal_mask_add(S)
    x2d = x.reshape(B * S, H)                                # contiguous; free reshape

    kernel = partial(_phi2_block_kernel, batch=B, seq=S,
                     use_attention=use_attention, use_mlp=use_mlp,
                     matmul_dtype=matmul_dtype)

    const_args = (packed["ln_w"], packed["ln_b"], packed["qkv_w"], packed["qkv_b"],
                  packed["dense_w"], packed["dense_b"], packed["fc1_w"], packed["fc1_b"],
                  packed["fc2_w"], packed["fc2_b"], cos, sin, mask_add)

    vmem_spec = pl.BlockSpec(memory_space=pltpu.MemorySpace.VMEM)   # whole array, VMEM resident

    out2d = pl.pallas_call(
        kernel,
        out_shape=jax.ShapeDtypeStruct((B * S, H), x.dtype),
        in_specs=[vmem_spec] * (1 + len(const_args)),
        out_specs=vmem_spec,
        compiler_params=pltpu.CompilerParams(vmem_limit_bytes=32 * 1024 * 1024),
    )(x2d, *const_args)
    return out2d.reshape(B, S, H)


# ---------------- parameters (deterministic synthetic init) ----------------
def init_params(key):
    ks = jax.random.split(key, 12)
    w = lambda k, shape: 0.02 * jax.random.normal(k, shape, jnp.float32)
    return {
        "ln_w": jnp.ones((HIDDEN,), jnp.float32),
        "ln_b": jnp.zeros((HIDDEN,), jnp.float32),
        "q_w": w(ks[0], (HIDDEN, HIDDEN)),     "q_b": w(ks[1], (HIDDEN,)),
        "k_w": w(ks[2], (HIDDEN, HIDDEN)),     "k_b": w(ks[3], (HIDDEN,)),
        "v_w": w(ks[4], (HIDDEN, HIDDEN)),     "v_b": w(ks[5], (HIDDEN,)),
        "dense_w": w(ks[6], (HIDDEN, HIDDEN)), "dense_b": w(ks[7], (HIDDEN,)),
        "fc1_w": w(ks[8], (HIDDEN, INTERMEDIATE)),  "fc1_b": w(ks[9], (INTERMEDIATE,)),
        "fc2_w": w(ks[10], (INTERMEDIATE, HIDDEN)), "fc2_b": w(ks[11], (HIDDEN,)),
    }


# ---------------- pure-JAX reference (standard, un-fused math) ----------------
def rotary_cos_sin(seq_len):
    inv_freq = 1.0 / (ROPE_THETA ** (
        jnp.arange(0, ROTARY_DIM, 2, dtype=jnp.float32) / ROTARY_DIM))
    t = jnp.arange(seq_len, dtype=jnp.float32)
    freqs = jnp.outer(t, inv_freq)
    emb = jnp.concatenate([freqs, freqs], axis=-1)
    return jnp.cos(emb), jnp.sin(emb)


def _rotate_half(x):
    x1, x2 = jnp.split(x, 2, axis=-1)
    return jnp.concatenate([-x2, x1], axis=-1)


def apply_partial_rotary(x, cos, sin):
    x_rot, x_pass = x[..., :ROTARY_DIM], x[..., ROTARY_DIM:]
    x_rot = x_rot * cos + _rotate_half(x_rot) * sin
    return jnp.concatenate([x_rot, x_pass], axis=-1)


def reference_forward(params, x, use_attention=True, use_mlp=True):
    B, S, H = x.shape
    residual = x
    x2d = x.reshape(B * S, H)
    mean = jnp.mean(x2d, axis=-1, keepdims=True)
    var = jnp.mean(jnp.square(x2d - mean), axis=-1, keepdims=True)
    hs = (x2d - mean) / jnp.sqrt(var + LN_EPS) * params["ln_w"] + params["ln_b"]

    attn_out = 0.0
    if use_attention:
        q = hs @ params["q_w"] + params["q_b"]
        k = hs @ params["k_w"] + params["k_b"]
        v = hs @ params["v_w"] + params["v_b"]
        q = q.reshape(B, S, NUM_HEADS, HEAD_DIM).transpose(0, 2, 1, 3)
        k = k.reshape(B, S, NUM_HEADS, HEAD_DIM).transpose(0, 2, 1, 3)
        v = v.reshape(B, S, NUM_HEADS, HEAD_DIM).transpose(0, 2, 1, 3)
        cos, sin = rotary_cos_sin(S)
        q = apply_partial_rotary(q, cos, sin)
        k = apply_partial_rotary(k, cos, sin)
        s = jnp.einsum("bhqd,bhkd->bhqk", q, k) / math.sqrt(HEAD_DIM)
        mask = jnp.tril(jnp.ones((S, S), bool))
        s = jnp.where(mask, s, jnp.finfo(jnp.float32).min)
        p = jax.nn.softmax(s, axis=-1)
        o = jnp.einsum("bhqk,bhkd->bhqd", p, v)
        o2d = o.transpose(0, 2, 1, 3).reshape(B * S, H)
        attn_out = o2d @ params["dense_w"] + params["dense_b"]

    mlp_out = 0.0
    if use_mlp:
        h1 = hs @ params["fc1_w"] + params["fc1_b"]
        c = math.sqrt(2.0 / math.pi)
        h1 = 0.5 * h1 * (1.0 + jnp.tanh(c * (h1 + 0.044715 * h1 ** 3)))
        mlp_out = h1 @ params["fc2_w"] + params["fc2_b"]

    out2d = attn_out + mlp_out + residual.reshape(B * S, H)
    return out2d.reshape(B, S, H)


if __name__ == "__main__":
    key = jax.random.PRNGKey(0)
    pkey, xkey = jax.random.split(key)
    params = init_params(pkey)
    x = jax.random.normal(xkey, (BATCH, SEQ, HIDDEN), jnp.float32)

    # f32-matmul path: all pruning-flag combinations vs. the un-fused JAX reference
    packed_f32 = pack_params(params, jnp.float32)
    for ua, um in [(True, True), (True, False), (False, True), (False, False)]:
        out = jax.block_until_ready(phi2_block_forward(packed_f32, x, ua, um))
        ref = reference_forward(params, x, ua, um)
        assert out.shape == (BATCH, SEQ, HIDDEN)
        assert jnp.allclose(out, ref, atol=5e-4, rtol=5e-4), f"mismatch (f32) ua={ua} um={um}"

    # bf16 matmul-operand path (v6e/v7x MXU-native); f32 accumulate + f32 LN/softmax/gelu stats
    packed_bf16 = pack_params(params, jnp.bfloat16)
    out_bf16 = jax.block_until_ready(phi2_block_forward(packed_bf16, x, True, True))
    ref = reference_forward(params, x, True, True)
    assert jnp.allclose(out_bf16, ref, atol=2e-2, rtol=2e-2), "mismatch (bf16 matmul path)"

    # TODO(synk): attention_mask / position_ids / KV-cache / output_attentions paths and
    # train-mode dropout are not modeled (forward covers the standard eval causal case).
    print("KERNEL_OK")
</pallas_src>

<mosaic_0001>
module attributes {stable_mosaic.version = 11 : i64} {
  func.func @_phi2_block_kernel(%arg0: memref<16x64xf32, #tpu.memory_space<vmem>>, %arg1: memref<1x64xf32, #tpu.memory_space<vmem>>, %arg2: memref<1x64xf32, #tpu.memory_space<vmem>>, %arg3: memref<64x320xf32, #tpu.memory_space<vmem>>, %arg4: memref<1x320xf32, #tpu.memory_space<vmem>>, %arg5: memref<64x64xf32, #tpu.memory_space<vmem>>, %arg6: memref<1x64xf32, #tpu.memory_space<vmem>>, %arg7: memref<64x256xf32, #tpu.memory_space<vmem>>, %arg8: memref<1x256xf32, #tpu.memory_space<vmem>>, %arg9: memref<256x64xf32, #tpu.memory_space<vmem>>, %arg10: memref<1x64xf32, #tpu.memory_space<vmem>>, %arg11: memref<16x64xf32, #tpu.memory_space<vmem>>, %arg12: memref<16x64xf32, #tpu.memory_space<vmem>>, %arg13: memref<8x8xf32, #tpu.memory_space<vmem>>, %arg14: memref<16x64xf32, #tpu.memory_space<vmem>>) attributes {dimension_semantics = [], scalar_prefetch = 0 : i64, scratch_operands = 0 : i64, tpu.core_type = #tpu.core_type<tc>} {
    %c0 = arith.constant 0 : index
    %c0_0 = arith.constant 0 : index
    %0 = vector.load %arg0[%c0, %c0_0] : memref<16x64xf32, #tpu.memory_space<vmem>>, vector<16x64xf32>
    %cst = arith.constant dense<0.000000e+00> : vector<16xf32>
    %1 = vector.multi_reduction <add>, %0, %cst [1] : vector<16x64xf32> to vector<16xf32>
    %2 = vector.shape_cast %1 : vector<16xf32> to vector<16x1xf32>
    %cst_1 = arith.constant 6.400000e+01 : f32
    %3 = vector.broadcast %cst_1 : f32 to vector<16x1xf32>
    %4 = arith.divf %2, %3 : vector<16x1xf32>
    %5 = vector.broadcast %4 : vector<16x1xf32> to vector<16x64xf32>
    %6 = arith.subf %0, %5 : vector<16x64xf32>
    %7 = arith.mulf %6, %6 : vector<16x64xf32>
    %cst_2 = arith.constant dense<0.000000e+00> : vector<16xf32>
    %8 = vector.multi_reduction <add>, %7, %cst_2 [1] : vector<16x64xf32> to vector<16xf32>
    %9 = vector.shape_cast %8 : vector<16xf32> to vector<16x1xf32>
    %cst_3 = arith.constant 6.400000e+01 : f32
    %10 = vector.broadcast %cst_3 : f32 to vector<16x1xf32>
    %11 = arith.divf %9, %10 : vector<16x1xf32>
    %12 = vector.broadcast %4 : vector<16x1xf32> to vector<16x64xf32>
    %13 = arith.subf %0, %12 : vector<16x64xf32>
    %cst_4 = arith.constant 9.99999974E-6 : f32
    %14 = vector.broadcast %cst_4 : f32 to vector<16x1xf32>
    %15 = arith.addf %11, %14 : vector<16x1xf32>
    %16 = math.rsqrt %15 : vector<16x1xf32>
    %17 = vector.broadcast %16 : vector<16x1xf32> to vector<16x64xf32>
    %18 = arith.mulf %13, %17 : vector<16x64xf32>
    %c0_5 = arith.constant 0 : index
    %c0_6 = arith.constant 0 : index
    %19 = vector.load %arg1[%c0_5, %c0_6] : memref<1x64xf32, #tpu.memory_space<vmem>>, vector<1x64xf32>
    %20 = vector.broadcast %19 : vector<1x64xf32> to vector<16x64xf32>
    %21 = arith.mulf %18, %20 : vector<16x64xf32>
    %c0_7 = arith.constant 0 : index
    %c0_8 = arith.constant 0 : index
    %22 = vector.load %arg2[%c0_7, %c0_8] : memref<1x64xf32, #tpu.memory_space<vmem>>, vector<1x64xf32>
    %23 = vector.broadcast %22 : vector<1x64xf32> to vector<16x64xf32>
    %24 = arith.addf %21, %23 : vector<16x64xf32>
    %c0_9 = arith.constant 0 : index
    %c0_10 = arith.constant 0 : index
    %25 = vector.load %arg3[%c0_9, %c0_10] : memref<64x320xf32, #tpu.memory_space<vmem>>, vector<64x320xf32>
    %cst_11 = arith.constant dense<0.000000e+00> : vector<16x320xf32>
    %26 = tpu.matmul %24, %25, %cst_11 {dimension_numbers = #tpu.dot_dimension_numbers<[1], [0], [0], [1], [0, 0, 1, 1], [], []>} : vector<16x64xf32>, vector<64x320xf32>, vector<16x320xf32> -> vector<16x320xf32>
    %c0_12 = arith.constant 0 : index
    %c0_13 = arith.constant 0 : index
    %27 = vector.load %arg4[%c0_12, %c0_13] : memref<1x320xf32, #tpu.memory_space<vmem>>, vector<1x320xf32>
    %28 = vector.broadcast %27 : vector<1x320xf32> to vector<16x320xf32>
    %29 = arith.addf %26, %28 : vector<16x320xf32>
    %c0_14 = arith.constant 0 : index
    %c0_15 = arith.constant 0 : index
    %30 = vector.load %arg11[%c0_14, %c0_15] : memref<16x64xf32, #tpu.memory_space<vmem>>, vector<16x64xf32>
    %c0_16 = arith.constant 0 : index
    %c0_17 = arith.constant 0 : index
    %31 = vector.load %arg12[%c0_16, %c0_17] : memref<16x64xf32, #tpu.memory_space<vmem>>, vector<16x64xf32>
    %32 = vector.extract_strided_slice %29 {offsets = [0, 0], sizes = [16, 64], strides = [1, 1]} : vector<16x320xf32> to vector<16x64xf32>
    %33 = arith.mulf %32, %30 : vector<16x64xf32>
    %34 = vector.extract_strided_slice %29 {offsets = [0, 64], sizes = [16, 64], strides = [1, 1]} : vector<16x320xf32> to vector<16x64xf32>
    %35 = arith.mulf %34, %31 : vector<16x64xf32>
    %36 = arith.addf %33, %35 : vector<16x64xf32>
    %37 = vector.extract_strided_slice %29 {offsets = [0, 128], sizes = [16, 64], strides = [1, 1]} : vector<16x320xf32> to vector<16x64xf32>
    %38 = arith.mulf %37, %30 : vector<16x64xf32>
    %39 = vector.extract_strided_slice %29 {offsets = [0, 192], sizes = [16, 64], strides = [1, 1]} : vector<16x320xf32> to vector<16x64xf32>
    %40 = arith.mulf %39, %31 : vector<16x64xf32>
    %41 = arith.addf %38, %40 : vector<16x64xf32>
    %42 = vector.extract_strided_slice %29 {offsets = [0, 256], sizes = [16, 64], strides = [1, 1]} : vector<16x320xf32> to vector<16x64xf32>
    %c0_18 = arith.constant 0 : index
    %c0_19 = arith.constant 0 : index
    %43 = vector.load %arg13[%c0_18, %c0_19] : memref<8x8xf32, #tpu.memory_space<vmem>>, vector<8x8xf32>
    %44 = vector.extract_strided_slice %36 {offsets = [0, 0], sizes = [8, 16], strides = [1, 1]} : vector<16x64xf32> to vector<8x16xf32>
    %45 = vector.extract_strided_slice %41 {offsets = [0, 0], sizes = [8, 16], strides = [1, 1]} : vector<16x64xf32> to vector<8x16xf32>
    %46 = vector.extract_strided_slice %42 {offsets = [0, 0], sizes = [8, 16], strides = [1, 1]} : vector<16x64xf32> to vector<8x16xf32>
    %47 = tpu.transpose %45, [1, 0] : vector<8x16xf32> -> vector<16x8xf32>
    %cst_20 = arith.constant dense<0.000000e+00> : vector<8x8xf32>
    %48 = tpu.matmul %44, %47, %cst_20 {dimension_numbers = #tpu.dot_dimension_numbers<[1], [0], [0], [1], [0, 0, 1, 1], [], []>} : vector<8x16xf32>, vector<16x8xf32>, vector<8x8xf32> -> vector<8x8xf32>
    %49 = arith.addf %48, %43 : vector<8x8xf32>
    %cst_21 = arith.constant dense<0xFF800000> : vector<8xf32>
    %50 = vector.multi_reduction <maximumf>, %49, %cst_21 [1] : vector<8x8xf32> to vector<8xf32>
    %51 = vector.shape_cast %50 : vector<8xf32> to vector<8x1xf32>
    %52 = vector.broadcast %51 : vector<8x1xf32> to vector<8x8xf32>
    %53 = arith.subf %49, %52 : vector<8x8xf32>
    %54 = math.exp %53 : vector<8x8xf32>
    %cst_22 = arith.constant dense<0.000000e+00> : vector<8xf32>
    %55 = vector.multi_reduction <add>, %54, %cst_22 [1] : vector<8x8xf32> to vector<8xf32>
    %56 = vector.shape_cast %55 : vector<8xf32> to vector<8x1xf32>
    %57 = tpu.reciprocal %56 {approx = true} : vector<8x1xf32> -> vector<8x1xf32>
    %58 = vector.broadcast %57 : vector<8x1xf32> to vector<8x8xf32>
    %59 = arith.mulf %54, %58 : vector<8x8xf32>
    %cst_23 = arith.constant dense<0.000000e+00> : vector<8x16xf32>
    %60 = tpu.matmul %59, %46, %cst_23 {dimension_numbers = #tpu.dot_dimension_numbers<[1], [0], [0], [1], [0, 0, 1, 1], [], []>} : vector<8x8xf32>, vector<8x16xf32>, vector<8x16xf32> -> vector<8x16xf32>
    %61 = vector.extract_strided_slice %36 {offsets = [0, 16], sizes = [8, 16], strides = [1, 1]} : vector<16x64xf32> to vector<8x16xf32>
    %62 = vector.extract_strided_slice %41 {offsets = [0, 16], sizes = [8, 16], strides = [1, 1]} : vector<16x64xf32> to vector<8x16xf32>
    %63 = vector.extract_strided_slice %42 {offsets = [0, 16], sizes = [8, 16], strides = [1, 1]} : vector<16x64xf32> to vector<8x16xf32>
    %64 = tpu.transpose %62, [1, 0] : vector<8x16xf32> -> vector<16x8xf32>
    %cst_24 = arith.constant dense<0.000000e+00> : vector<8x8xf32>
    %65 = tpu.matmul %61, %64, %cst_24 {dimension_numbers = #tpu.dot_dimension_numbers<[1], [0], [0], [1], [0, 0, 1, 1], [], []>} : vector<8x16xf32>, vector<16x8xf32>, vector<8x8xf32> -> vector<8x8xf32>
    %66 = arith.addf %65, %43 : vector<8x8xf32>
    %cst_25 = arith.constant dense<0xFF800000> : vector<8xf32>
    %67 = vector.multi_reduction <maximumf>, %66, %cst_25 [1] : vector<8x8xf32> to vector<8xf32>
    %68 = vector.shape_cast %67 : vector<8xf32> to vector<8x1xf32>
    %69 = vector.broadcast %68 : vector<8x1xf32> to vector<8x8xf32>
    %70 = arith.subf %66, %69 : vector<8x8xf32>
    %71 = math.exp %70 : vector<8x8xf32>
    %cst_26 = arith.constant dense<0.000000e+00> : vector<8xf32>
    %72 = vector.multi_reduction <add>, %71, %cst_26 [1] : vector<8x8xf32> to vector<8xf32>
    %73 = vector.shape_cast %72 : vector<8xf32> to vector<8x1xf32>
    %74 = tpu.reciprocal %73 {approx = true} : vector<8x1xf32> -> vector<8x1xf32>
    %75 = vector.broadcast %74 : vector<8x1xf32> to vector<8x8xf32>
    %76 = arith.mulf %71, %75 : vector<8x8xf32>
    %cst_27 = arith.constant dense<0.000000e+00> : vector<8x16xf32>
    %77 = tpu.matmul %76, %63, %cst_27 {dimension_numbers = #tpu.dot_dimension_numbers<[1], [0], [0], [1], [0, 0, 1, 1], [], []>} : vector<8x8xf32>, vector<8x16xf32>, vector<8x16xf32> -> vector<8x16xf32>
    %78 = vector.extract_strided_slice %36 {offsets = [0, 32], sizes = [8, 16], strides = [1, 1]} : vector<16x64xf32> to vector<8x16xf32>
    %79 = vector.extract_strided_slice %41 {offsets = [0, 32], sizes = [8, 16], strides = [1, 1]} : vector<16x64xf32> to vector<8x16xf32>
    %80 = vector.extract_strided_slice %42 {offsets = [0, 32], sizes = [8, 16], strides = [1, 1]} : vector<16x64xf32> to vector<8x16xf32>
    %81 = tpu.transpose %79, [1, 0] : vector<8x16xf32> -> vector<16x8xf32>
    %cst_28 = arith.constant dense<0.000000e+00> : vector<8x8xf32>
    %82 = tpu.matmul %78, %81, %cst_28 {dimension_numbers = #tpu.dot_dimension_numbers<[1], [0], [0], [1], [0, 0, 1, 1], [], []>} : vector<8x16xf32>, vector<16x8xf32>, vector<8x8xf32> -> vector<8x8xf32>
    %83 = arith.addf %82, %43 : vector<8x8xf32>
    %cst_29 = arith.constant dense<0xFF800000> : vector<8xf32>
    %84 = vector.multi_reduction <maximumf>, %83, %cst_29 [1] : vector<8x8xf32> to vector<8xf32>
    %85 = vector.shape_cast %84 : vector<8xf32> to vector<8x1xf32>
    %86 = vector.broadcast %85 : vector<8x1xf32> to vector<8x8xf32>
    %87 = arith.subf %83, %86 : vector<8x8xf32>
    %88 = math.exp %87 : vector<8x8xf32>
    %cst_30 = arith.constant dense<0.000000e+00> : vector<8xf32>
    %89 = vector.multi_reduction <add>, %88, %cst_30 [1] : vector<8x8xf32> to vector<8xf32>
    %90 = vector.shape_cast %89 : vector<8xf32> to vector<8x1xf32>
    %91 = tpu.reciprocal %90 {approx = true} : vector<8x1xf32> -> vector<8x1xf32>
    %92 = vector.broadcast %91 : vector<8x1xf32> to vector<8x8xf32>
    %93 = arith.mulf %88, %92 : vector<8x8xf32>
    %cst_31 = arith.constant dense<0.000000e+00> : vector<8x16xf32>
    %94 = tpu.matmul %93, %80, %cst_31 {dimension_numbers = #tpu.dot_dimension_numbers<[1], [0], [0], [1], [0, 0, 1, 1], [], []>} : vector<8x8xf32>, vector<8x16xf32>, vector<8x16xf32> -> vector<8x16xf32>
    %95 = vector.extract_strided_slice %36 {offsets = [0, 48], sizes = [8, 16], strides = [1, 1]} : vector<16x64xf32> to vector<8x16xf32>
    %96 = vector.extract_strided_slice %41 {offsets = [0, 48], sizes = [8, 16], strides = [1, 1]} : vector<16x64xf32> to vector<8x16xf32>
    %97 = vector.extract_strided_slice %42 {offsets = [0, 48], sizes = [8, 16], strides = [1, 1]} : vector<16x64xf32> to vector<8x16xf32>
    %98 = tpu.transpose %96, [1, 0] : vector<8x16xf32> -> vector<16x8xf32>
    %cst_32 = arith.constant dense<0.000000e+00> : vector<8x8xf32>
    %99 = tpu.matmul %95, %98, %cst_32 {dimension_numbers = #tpu.dot_dimension_numbers<[1], [0], [0], [1], [0, 0, 1, 1], [], []>} : vector<8x16xf32>, vector<16x8xf32>, vector<8x8xf32> -> vector<8x8xf32>
    %100 = arith.addf %99, %43 : vector<8x8xf32>
    %cst_33 = arith.constant dense<0xFF800000> : vector<8xf32>
    %101 = vector.multi_reduction <maximumf>, %100, %cst_33 [1] : vector<8x8xf32> to vector<8xf32>
    %102 = vector.shape_cast %101 : vector<8xf32> to vector<8x1xf32>
    %103 = vector.broadcast %102 : vector<8x1xf32> to vector<8x8xf32>
    %104 = arith.subf %100, %103 : vector<8x8xf32>
    %105 = math.exp %104 : vector<8x8xf32>
    %cst_34 = arith.constant dense<0.000000e+00> : vector<8xf32>
    %106 = vector.multi_reduction <add>, %105, %cst_34 [1] : vector<8x8xf32> to vector<8xf32>
    %107 = vector.shape_cast %106 : vector<8xf32> to vector<8x1xf32>
    %108 = tpu.reciprocal %107 {approx = true} : vector<8x1xf32> -> vector<8x1xf32>
    %109 = vector.broadcast %108 : vector<8x1xf32> to vector<8x8xf32>
    %110 = arith.mulf %105, %109 : vector<8x8xf32>
    %cst_35 = arith.constant dense<0.000000e+00> : vector<8x16xf32>
    %111 = tpu.matmul %110, %97, %cst_35 {dimension_numbers = #tpu.dot_dimension_numbers<[1], [0], [0], [1], [0, 0, 1, 1], [], []>} : vector<8x8xf32>, vector<8x16xf32>, vector<8x16xf32> -> vector<8x16xf32>
    %112 = tpu.concatenate %60, %77, %94, %111 in 1 : vector<8x16xf32>, vector<8x16xf32>, vector<8x16xf32>, vector<8x16xf32> -> vector<8x64xf32>
    %113 = vector.extract_strided_slice %36 {offsets = [8, 0], sizes = [8, 16], strides = [1, 1]} : vector<16x64xf32> to vector<8x16xf32>
    %114 = vector.extract_strided_slice %41 {offsets = [8, 0], sizes = [8, 16], strides = [1, 1]} : vector<16x64xf32> to vector<8x16xf32>
    %115 = vector.extract_strided_slice %42 {offsets = [8, 0], sizes = [8, 16], strides = [1, 1]} : vector<16x64xf32> to vector<8x16xf32>
    %116 = tpu.transpose %114, [1, 0] : vector<8x16xf32> -> vector<16x8xf32>
    %cst_36 = arith.constant dense<0.000000e+00> : vector<8x8xf32>
    %117 = tpu.matmul %113, %116, %cst_36 {dimension_numbers = #tpu.dot_dimension_numbers<[1], [0], [0], [1], [0, 0, 1, 1], [], []>} : vector<8x16xf32>, vector<16x8xf32>, vector<8x8xf32> -> vector<8x8xf32>
    %118 = arith.addf %117, %43 : vector<8x8xf32>
    %cst_37 = arith.constant dense<0xFF800000> : vector<8xf32>
    %119 = vector.multi_reduction <maximumf>, %118, %cst_37 [1] : vector<8x8xf32> to vector<8xf32>
    %120 = vector.shape_cast %119 : vector<8xf32> to vector<8x1xf32>
    %121 = vector.broadcast %120 : vector<8x1xf32> to vector<8x8xf32>
    %122 = arith.subf %118, %121 : vector<8x8xf32>
    %123 = math.exp %122 : vector<8x8xf32>
    %cst_38 = arith.constant dense<0.000000e+00> : vector<8xf32>
    %124 = vector.multi_reduction <add>, %123, %cst_38 [1] : vector<8x8xf32> to vector<8xf32>
    %125 = vector.shape_cast %124 : vector<8xf32> to vector<8x1xf32>
    %126 = tpu.reciprocal %125 {approx = true} : vector<8x1xf32> -> vector<8x1xf32>
    %127 = vector.broadcast %126 : vector<8x1xf32> to vector<8x8xf32>
    %128 = arith.mulf %123, %127 : vector<8x8xf32>
    %cst_39 = arith.constant dense<0.000000e+00> : vector<8x16xf32>
    %129 = tpu.matmul %128, %115, %cst_39 {dimension_numbers = #tpu.dot_dimension_numbers<[1], [0], [0], [1], [0, 0, 1, 1], [], []>} : vector<8x8xf32>, vector<8x16xf32>, vector<8x16xf32> -> vector<8x16xf32>
    %130 = vector.extract_strided_slice %36 {offsets = [8, 16], sizes = [8, 16], strides = [1, 1]} : vector<16x64xf32> to vector<8x16xf32>
    %131 = vector.extract_strided_slice %41 {offsets = [8, 16], sizes = [8, 16], strides = [1, 1]} : vector<16x64xf32> to vector<8x16xf32>
    %132 = vector.extract_strided_slice %42 {offsets = [8, 16], sizes = [8, 16], strides = [1, 1]} : vector<16x64xf32> to vector<8x16xf32>
    %133 = tpu.transpose %131, [1, 0] : vector<8x16xf32> -> vector<16x8xf32>
    %cst_40 = arith.constant dense<0.000000e+00> : vector<8x8xf32>
    %134 = tpu.matmul %130, %133, %cst_40 {dimension_numbers = #tpu.dot_dimension_numbers<[1], [0], [0], [1], [0, 0, 1, 1], [], []>} : vector<8x16xf32>, vector<16x8xf32>, vector<8x8xf32> -> vector<8x8xf32>
    %135 = arith.addf %134, %43 : vector<8x8xf32>
    %cst_41 = arith.constant dense<0xFF800000> : vector<8xf32>
    %136 = vector.multi_reduction <maximumf>, %135, %cst_41 [1] : vector<8x8xf32> to vector<8xf32>
    %137 = vector.shape_cast %136 : vector<8xf32> to vector<8x1xf32>
    %138 = vector.broadcast %137 : vector<8x1xf32> to vector<8x8xf32>
    %139 = arith.subf %135, %138 : vector<8x8xf32>
    %140 = math.exp %139 : vector<8x8xf32>
    %cst_42 = arith.constant dense<0.000000e+00> : vector<8xf32>
    %141 = vector.multi_reduction <add>, %140, %cst_42 [1] : vector<8x8xf32> to vector<8xf32>
    %142 = vector.shape_cast %141 : vector<8xf32> to vector<8x1xf32>
    %143 = tpu.reciprocal %142 {approx = true} : vector<8x1xf32> -> vector<8x1xf32>
    %144 = vector.broadcast %143 : vector<8x1xf32> to vector<8x8xf32>
    %145 = arith.mulf %140, %144 : vector<8x8xf32>
    %cst_43 = arith.constant dense<0.000000e+00> : vector<8x16xf32>
    %146 = tpu.matmul %145, %132, %cst_43 {dimension_numbers = #tpu.dot_dimension_numbers<[1], [0], [0], [1], [0, 0, 1, 1], [], []>} : vector<8x8xf32>, vector<8x16xf32>, vector<8x16xf32> -> vector<8x16xf32>
    %147 = vector.extract_strided_slice %36 {offsets = [8, 32], sizes = [8, 16], strides = [1, 1]} : vector<16x64xf32> to vector<8x16xf32>
    %148 = vector.extract_strided_slice %41 {offsets = [8, 32], sizes = [8, 16], strides = [1, 1]} : vector<16x64xf32> to vector<8x16xf32>
    %149 = vector.extract_strided_slice %42 {offsets = [8, 32], sizes = [8, 16], strides = [1, 1]} : vector<16x64xf32> to vector<8x16xf32>
    %150 = tpu.transpose %148, [1, 0] : vector<8x16xf32> -> vector<16x8xf32>
    %cst_44 = arith.constant dense<0.000000e+00> : vector<8x8xf32>
    %151 = tpu.matmul %147, %150, %cst_44 {dimension_numbers = #tpu.dot_dimension_numbers<[1], [0], [0], [1], [0, 0, 1, 1], [], []>} : vector<8x16xf32>, vector<16x8xf32>, vector<8x8xf32> -> vector<8x8xf32>
    %152 = arith.addf %151, %43 : vector<8x8xf32>
    %cst_45 = arith.constant dense<0xFF800000> : vector<8xf32>
    %153 = vector.multi_reduction <maximumf>, %152, %cst_45 [1] : vector<8x8xf32> to vector<8xf32>
    %154 = vector.shape_cast %153 : vector<8xf32> to vector<8x1xf32>
    %155 = vector.broadcast %154 : vector<8x1xf32> to vector<8x8xf32>
    %156 = arith.subf %152, %155 : vector<8x8xf32>
    %157 = math.exp %156 : vector<8x8xf32>
    %cst_46 = arith.constant dense<0.000000e+00> : vector<8xf32>
    %158 = vector.multi_reduction <add>, %157, %cst_46 [1] : vector<8x8xf32> to vector<8xf32>
    %159 = vector.shape_cast %158 : vector<8xf32> to vector<8x1xf32>
    %160 = tpu.reciprocal %159 {approx = true} : vector<8x1xf32> -> vector<8x1xf32>
    %161 = vector.broadcast %160 : vector<8x1xf32> to vector<8x8xf32>
    %162 = arith.mulf %157, %161 : vector<8x8xf32>
    %cst_47 = arith.constant dense<0.000000e+00> : vector<8x16xf32>
    %163 = tpu.matmul %162, %149, %cst_47 {dimension_numbers = #tpu.dot_dimension_numbers<[1], [0], [0], [1], [0, 0, 1, 1], [], []>} : vector<8x8xf32>, vector<8x16xf32>, vector<8x16xf32> -> vector<8x16xf32>
    %164 = vector.extract_strided_slice %36 {offsets = [8, 48], sizes = [8, 16], strides = [1, 1]} : vector<16x64xf32> to vector<8x16xf32>
    %165 = vector.extract_strided_slice %41 {offsets = [8, 48], sizes = [8, 16], strides = [1, 1]} : vector<16x64xf32> to vector<8x16xf32>
    %166 = vector.extract_strided_slice %42 {offsets = [8, 48], sizes = [8, 16], strides = [1, 1]} : vector<16x64xf32> to vector<8x16xf32>
    %167 = tpu.transpose %165, [1, 0] : vector<8x16xf32> -> vector<16x8xf32>
    %cst_48 = arith.constant dense<0.000000e+00> : vector<8x8xf32>
    %168 = tpu.matmul %164, %167, %cst_48 {dimension_numbers = #tpu.dot_dimension_numbers<[1], [0], [0], [1], [0, 0, 1, 1], [], []>} : vector<8x16xf32>, vector<16x8xf32>, vector<8x8xf32> -> vector<8x8xf32>
    %169 = arith.addf %168, %43 : vector<8x8xf32>
    %cst_49 = arith.constant dense<0xFF800000> : vector<8xf32>
    %170 = vector.multi_reduction <maximumf>, %169, %cst_49 [1] : vector<8x8xf32> to vector<8xf32>
    %171 = vector.shape_cast %170 : vector<8xf32> to vector<8x1xf32>
    %172 = vector.broadcast %171 : vector<8x1xf32> to vector<8x8xf32>
    %173 = arith.subf %169, %172 : vector<8x8xf32>
    %174 = math.exp %173 : vector<8x8xf32>
    %cst_50 = arith.constant dense<0.000000e+00> : vector<8xf32>
    %175 = vector.multi_reduction <add>, %174, %cst_50 [1] : vector<8x8xf32> to vector<8xf32>
    %176 = vector.shape_cast %175 : vector<8xf32> to vector<8x1xf32>
    %177 = tpu.reciprocal %176 {approx = true} : vector<8x1xf32> -> vector<8x1xf32>
    %178 = vector.broadcast %177 : vector<8x1xf32> to vector<8x8xf32>
    %179 = arith.mulf %174, %178 : vector<8x8xf32>
    %cst_51 = arith.constant dense<0.000000e+00> : vector<8x16xf32>
    %180 = tpu.matmul %179, %166, %cst_51 {dimension_numbers = #tpu.dot_dimension_numbers<[1], [0], [0], [1], [0, 0, 1, 1], [], []>} : vector<8x8xf32>, vector<8x16xf32>, vector<8x16xf32> -> vector<8x16xf32>
    %181 = tpu.concatenate %129, %146, %163, %180 in 1 : vector<8x16xf32>, vector<8x16xf32>, vector<8x16xf32>, vector<8x16xf32> -> vector<8x64xf32>
    %182 = tpu.concatenate %112, %181 in 0 : vector<8x64xf32>, vector<8x64xf32> -> vector<16x64xf32>
    %c0_52 = arith.constant 0 : index
    %c0_53 = arith.constant 0 : index
    %183 = vector.load %arg5[%c0_52, %c0_53] : memref<64x64xf32, #tpu.memory_space<vmem>>, vector<64x64xf32>
    %cst_54 = arith.constant dense<0.000000e+00> : vector<16x64xf32>
    %184 = tpu.matmul %182, %183, %cst_54 {dimension_numbers = #tpu.dot_dimension_numbers<[1], [0], [0], [1], [0, 0, 1, 1], [], []>} : vector<16x64xf32>, vector<64x64xf32>, vector<16x64xf32> -> vector<16x64xf32>
    %185 = arith.addf %0, %184 : vector<16x64xf32>
    %c0_55 = arith.constant 0 : index
    %c0_56 = arith.constant 0 : index
    %186 = vector.load %arg6[%c0_55, %c0_56] : memref<1x64xf32, #tpu.memory_space<vmem>>, vector<1x64xf32>
    %187 = vector.broadcast %186 : vector<1x64xf32> to vector<16x64xf32>
    %188 = arith.addf %185, %187 : vector<16x64xf32>
    %c0_57 = arith.constant 0 : index
    %c0_58 = arith.constant 0 : index
    %189 = vector.load %arg7[%c0_57, %c0_58] : memref<64x256xf32, #tpu.memory_space<vmem>>, vector<64x256xf32>
    %cst_59 = arith.constant dense<0.000000e+00> : vector<16x256xf32>
    %190 = tpu.matmul %24, %189, %cst_59 {dimension_numbers = #tpu.dot_dimension_numbers<[1], [0], [0], [1], [0, 0, 1, 1], [], []>} : vector<16x64xf32>, vector<64x256xf32>, vector<16x256xf32> -> vector<16x256xf32>
    %c0_60 = arith.constant 0 : index
    %c0_61 = arith.constant 0 : index
    %191 = vector.load %arg8[%c0_60, %c0_61] : memref<1x256xf32, #tpu.memory_space<vmem>>, vector<1x256xf32>
    %192 = vector.broadcast %191 : vector<1x256xf32> to vector<16x256xf32>
    %193 = arith.addf %190, %192 : vector<16x256xf32>
    %cst_62 = arith.constant 5.000000e-01 : f32
    %194 = vector.broadcast %cst_62 : f32 to vector<16x256xf32>
    %195 = arith.mulf %194, %193 : vector<16x256xf32>
    %cst_63 = arith.constant 4.471500e-02 : f32
    %196 = vector.broadcast %cst_63 : f32 to vector<16x256xf32>
    %197 = arith.mulf %196, %193 : vector<16x256xf32>
    %198 = arith.mulf %197, %193 : vector<16x256xf32>
    %199 = arith.mulf %198, %193 : vector<16x256xf32>
    %200 = arith.addf %193, %199 : vector<16x256xf32>
    %cst_64 = arith.constant 0.797884583 : f32
    %201 = vector.broadcast %cst_64 : f32 to vector<16x256xf32>
    %202 = arith.mulf %201, %200 : vector<16x256xf32>
    %203 = math.tanh %202 : vector<16x256xf32>
    %cst_65 = arith.constant 1.000000e+00 : f32
    %204 = vector.broadcast %cst_65 : f32 to vector<16x256xf32>
    %205 = arith.addf %204, %203 : vector<16x256xf32>
    %206 = arith.mulf %195, %205 : vector<16x256xf32>
    %c0_66 = arith.constant 0 : index
    %c0_67 = arith.constant 0 : index
    %207 = vector.load %arg9[%c0_66, %c0_67] : memref<256x64xf32, #tpu.memory_space<vmem>>, vector<256x64xf32>
    %cst_68 = arith.constant dense<0.000000e+00> : vector<16x64xf32>
    %208 = tpu.matmul %206, %207, %cst_68 {dimension_numbers = #tpu.dot_dimension_numbers<[1], [0], [0], [1], [0, 0, 1, 1], [], []>} : vector<16x256xf32>, vector<256x64xf32>, vector<16x64xf32> -> vector<16x64xf32>
    %209 = arith.addf %188, %208 : vector<16x64xf32>
    %c0_69 = arith.constant 0 : index
    %c0_70 = arith.constant 0 : index
    %210 = vector.load %arg10[%c0_69, %c0_70] : memref<1x64xf32, #tpu.memory_space<vmem>>, vector<1x64xf32>
    %211 = vector.broadcast %210 : vector<1x64xf32> to vector<16x64xf32>
    %212 = arith.addf %209, %211 : vector<16x64xf32>
    %c0_71 = arith.constant 0 : index
    %c0_72 = arith.constant 0 : index
    %213 = vector.load %arg14[%c0_71, %c0_72] : memref<16x64xf32, #tpu.memory_space<vmem>>, vector<16x64xf32>
    tpu.vector_store %arg14[%c0_71, %c0_72], %212 {strides = array<i32>} : memref<16x64xf32, #tpu.memory_space<vmem>>, vector<16x64xf32>,
    return
  }
}

</mosaic_0001>

<llo_original>
// kernel: tpu_custom_call.1
$region0: #{tpu_custom_call.1}
  #allocation0 [shape = 'u32[]', space=smem, size = 0x4, offset = 0x4, fixed_abs, tag = 'smem constant byte address 0x4 - core index']
  #allocation1 [shape = 'u32[144,128]{1,0:T(1,128)}', space=vmem, size = 0x12000, scoped, tag = 'internal scratch']
  %s0 = inlined_call_operand.hbm [shape: f32[16,64], index: 0, kind: input, shape index: {}]
  %s1 = inlined_call_operand.hbm [shape: f32[1,64], index: 1, kind: input, shape index: {}]
  %s2 = inlined_call_operand.hbm [shape: f32[1,64], index: 2, kind: input, shape index: {}]
  %s3 = inlined_call_operand.vmem [shape: f32[64,320], index: 3, kind: input, shape index: {}]
  %s4 = inlined_call_operand.vmem [shape: f32[1,320], index: 4, kind: input, shape index: {}]
  %s5 = inlined_call_operand.vmem [shape: f32[64,64], index: 5, kind: input, shape index: {}]
  %s6 = inlined_call_operand.hbm [shape: f32[1,64], index: 6, kind: input, shape index: {}]
  %s7 = inlined_call_operand.vmem [shape: f32[64,256], index: 7, kind: input, shape index: {}]
  %s8 = inlined_call_operand.vmem [shape: f32[1,256], index: 8, kind: input, shape index: {}]
  %s9 = inlined_call_operand.vmem [shape: f32[256,64], index: 9, kind: input, shape index: {}]
  %s10 = inlined_call_operand.hbm [shape: f32[1,64], index: 10, kind: input, shape index: {}]
  %s11 = inlined_call_operand.vmem [shape: f32[16,64], index: 11, kind: input, shape index: {}]
  %s12 = inlined_call_operand.vmem [shape: f32[16,64], index: 12, kind: input, shape index: {}]
  %s13 = inlined_call_operand.vmem [shape: f32[8,8], index: 13, kind: input, shape index: {}]
  %s14 = inlined_call_operand.hbm [shape: f32[16,64], index: 14, kind: output, shape index: {}]
  %s15 = sld [smem:[#allocation0]]
  $region86: #{tpu_custom_call.1} parent=0
    _
  %s17 = ssub.s32 1, %s15
  %s18 = scalar_select 0, %s17, %s15
  $region1: #{tpu_custom_call.1} parent=0
    #allocation2 [shape = 'u8[8192]{0}', space=vmem, size = 0x2000, scoped, tag = 'input window, operand 0, single buffered']
    #allocation3 [shape = 's32[1]{0}', space=sflag, size = 0x4, scoped, tag = 'scoped memory for tpu_custom_call.1']
    #allocation4 [shape = 's32[1]{0}', space=sflag, size = 0x4, scoped, tag = 'scoped memory for tpu_custom_call.1']
    #allocation5 [shape = 'u8[512]{0}', space=vmem, size = 0x400, scoped, tag = 'input window, operand 1, single buffered']
    #allocation6 [shape = 's32[1]{0}', space=sflag, size = 0x4, scoped, tag = 'scoped memory for tpu_custom_call.1']
    #allocation7 [shape = 'u8[512]{0}', space=vmem, size = 0x400, scoped, tag = 'input window, operand 2, single buffered']
    #allocation8 [shape = 'u8[512]{0}', space=vmem, size = 0x400, scoped, tag = 'input window, operand 6, single buffered']
    #allocation9 [shape = 's32[1]{0}', space=sflag, size = 0x4, scoped, tag = 'scoped memory for tpu_custom_call.1']
    #allocation10 [shape = 'u8[512]{0}', space=vmem, size = 0x400, scoped, tag = 'input window, operand 10, single buffered']
    #allocation11 [shape = 'u8[8192]{0}', space=vmem, size = 0x2000, scoped, tag = 'output window, operand 0, single buffered']
    %19 = vsyncpa [#allocation3], 0
    %20 = vsyncpa [#allocation6], 0
    %21 = vsyncpa [#allocation9], 0
    %22 = vsyncpa [#allocation4], 0
    // Predicated region
    $region2: #{tpu_custom_call.1} parent=1 // pred_check
      _
    $region3: #{tpu_custom_call.1} parent=1 // pred_check_branch
      %24 = sbr.rel (0) target = $region5
    $region4: #{tpu_custom_call.1} parent=1 // pred_region
      %s26 = ssub.s32 256, 256
      %27 = vsyncadd [#allocation3], %s26
      %s28 = sshll.u32 [#allocation2], 4
      %s29 = int_to_ptr.vmem [resolvable:$true] %s28
      %34 = dma.hbm_to_vmem [thread:$0]  %s0, 256, %s29, [#allocation3], 128, 128, 8
    $region5: #{tpu_custom_call.1} parent=1 // pred_fallthru
      _
    // Predicated region
    $region6: #{tpu_custom_call.1} parent=1 // pred_check
      _
    $region7: #{tpu_custom_call.1} parent=1 // pred_check_branch
      %36 = sbr.rel (0) target = $region9
    $region8: #{tpu_custom_call.1} parent=1 // pred_region
      %s38 = ssub.s32 16, 16
      %39 = vsyncadd [#allocation6], %s38
      %s41 = sshll.u32 [#allocation5], 4
      %s42 = int_to_ptr.vmem [resolvable:$true] %s41
      %44 = dma.hbm_to_vmem [thread:$0]  %s1, 16, %s42, [#allocation6]
    $region9: #{tpu_custom_call.1} parent=1 // pred_fallthru
      _
    // Predicated region
    $region10: #{tpu_custom_call.1} parent=1 // pred_check
      _
    $region11: #{tpu_custom_call.1} parent=1 // pred_check_branch
      %46 = sbr.rel (0) target = $region13
    $region12: #{tpu_custom_call.1} parent=1 // pred_region
      %s48 = ssub.s32 16, 16
      %49 = vsyncadd [#allocation6], %s48
      %s51 = sshll.u32 [#allocation7], 4
      %s52 = int_to_ptr.vmem [resolvable:$true] %s51
      %54 = dma.hbm_to_vmem [thread:$0]  %s2, 16, %s52, [#allocation6]
    $region13: #{tpu_custom_call.1} parent=1 // pred_fallthru
      _
    // Predicated region
    $region14: #{tpu_custom_call.1} parent=1 // pred_check
      _
    $region15: #{tpu_custom_call.1} parent=1 // pred_check_branch
      %56 = sbr.rel (0) target = $region17
    $region16: #{tpu_custom_call.1} parent=1 // pred_region
      _
    $region17: #{tpu_custom_call.1} parent=1 // pred_fallthru
      _
    // Predicated region
    $region18: #{tpu_custom_call.1} parent=1 // pred_check
      _
    $region19: #{tpu_custom_call.1} parent=1 // pred_check_branch
      %58 = sbr.rel (0) target = $region21
    $region20: #{tpu_custom_call.1} parent=1 // pred_region
      _
    $region21: #{tpu_custom_call.1} parent=1 // pred_fallthru
      _
    // Predicated region
    $region22: #{tpu_custom_call.1} parent=1 // pred_check
      _
    $region23: #{tpu_custom_call.1} parent=1 // pred_check_branch
      %60 = sbr.rel (0) target = $region25
    $region24: #{tpu_custom_call.1} parent=1 // pred_region
      _
    $region25: #{tpu_custom_call.1} parent=1 // pred_fallthru
      _
    // Predicated region
    $region26: #{tpu_custom_call.1} parent=1 // pred_check
      _
    $region27: #{tpu_custom_call.1} parent=1 // pred_check_branch
      %62 = sbr.rel (0) target = $region29
    $region28: #{tpu_custom_call.1} parent=1 // pred_region
      %s64 = ssub.s32 16, 16
      %65 = vsyncadd [#allocation9], %s64
      %s67 = sshll.u32 [#allocation8], 4
      %s68 = int_to_ptr.vmem [resolvable:$true] %s67
      %70 = dma.hbm_to_vmem [thread:$0]  %s6, 16, %s68, [#allocation9]
    $region29: #{tpu_custom_call.1} parent=1 // pred_fallthru
      _
    // Predicated region
    $region30: #{tpu_custom_call.1} parent=1 // pred_check
      _
    $region31: #{tpu_custom_call.1} parent=1 // pred_check_branch
      %72 = sbr.rel (0) target = $region33
    $region32: #{tpu_custom_call.1} parent=1 // pred_region
      _
    $region33: #{tpu_custom_call.1} parent=1 // pred_fallthru
      _
    // Predicated region
    $region34: #{tpu_custom_call.1} parent=1 // pred_check
      _
    $region35: #{tpu_custom_call.1} parent=1 // pred_check_branch
      %74 = sbr.rel (0) target = $region37
    $region36: #{tpu_custom_call.1} parent=1 // pred_region
      _
    $region37: #{tpu_custom_call.1} parent=1 // pred_fallthru
      _
    // Predicated region
    $region38: #{tpu_custom_call.1} parent=1 // pred_check
      _
    $region39: #{tpu_custom_call.1} parent=1 // pred_check_branch
      %76 = sbr.rel (0) target = $region41
    $region40: #{tpu_custom_call.1} parent=1 // pred_region
      _
    $region41: #{tpu_custom_call.1} parent=1 // pred_fallthru
      _
    // Predicated region
    $region42: #{tpu_custom_call.1} parent=1 // pred_check
      _
    $region43: #{tpu_custom_call.1} parent=1 // pred_check_branch
      %78 = sbr.rel (0) target = $region45
    $region44: #{tpu_custom_call.1} parent=1 // pred_region
      %s80 = ssub.s32 16, 16
      %81 = vsyncadd [#allocation9], %s80
      %s83 = sshll.u32 [#allocation10], 4
      %s84 = int_to_ptr.vmem [resolvable:$true] %s83
      %86 = dma.hbm_to_vmem [thread:$0]  %s10, 16, %s84, [#allocation9]
    $region45: #{tpu_custom_call.1} parent=1 // pred_fallthru
      _
    // Predicated region
    $region46: #{tpu_custom_call.1} parent=1 // pred_check
      _
    $region47: #{tpu_custom_call.1} parent=1 // pred_check_branch
      %88 = sbr.rel (0) target = $region49
    $region48: #{tpu_custom_call.1} parent=1 // pred_region
      _
    $region49: #{tpu_custom_call.1} parent=1 // pred_fallthru
      _
    // Predicated region
    $region50: #{tpu_custom_call.1} parent=1 // pred_check
      _
    $region51: #{tpu_custom_call.1} parent=1 // pred_check_branch
      %90 = sbr.rel (0) target = $region53
    $region52: #{tpu_custom_call.1} parent=1 // pred_region
      _
    $region53: #{tpu_custom_call.1} parent=1 // pred_fallthru
      _
    // Predicated region
    $region54: #{tpu_custom_call.1} parent=1 // pred_check
      _
    $region55: #{tpu_custom_call.1} parent=1 // pred_check_branch
      %92 = sbr.rel (0) target = $region57
    $region56: #{tpu_custom_call.1} parent=1 // pred_region
      _
    $region57: #{tpu_custom_call.1} parent=1 // pred_fallthru
      _
    // Predicated region
    $region58: #{tpu_custom_call.1} parent=1 // pred_check
      _
    $region59: #{tpu_custom_call.1} parent=1 // pred_check_branch
      %94 = sbr.rel (0) target = $region61
    $region60: #{tpu_custom_call.1} parent=1 // pred_region
      %95 = dma.done [#allocation3], 256
    $region61: #{tpu_custom_call.1} parent=1 // pred_fallthru
      _
    // Predicated region
    $region62: #{tpu_custom_call.1} parent=1 // pred_check
      _
    $region63: #{tpu_custom_call.1} parent=1 // pred_check_branch
      %97 = sbr.rel (0) target = $region65
    $region64: #{tpu_custom_call.1} parent=1 // pred_region
      %98 = dma.done [#allocation6], 16
    $region65: #{tpu_custom_call.1} parent=1 // pred_fallthru
      _
    // Predicated region
    $region66: #{tpu_custom_call.1} parent=1 // pred_check
      _
    $region67: #{tpu_custom_call.1} parent=1 // pred_check_branch
      %100 = sbr.rel (0) target = $region69
    $region68: #{tpu_custom_call.1} parent=1 // pred_region
      %101 = dma.done [#allocation6], 16
    $region69: #{tpu_custom_call.1} parent=1 // pred_fallthru
      _
    // Predicated region
    $region70: #{tpu_custom_call.1} parent=1 // pred_check
      _
    $region71: #{tpu_custom_call.1} parent=1 // pred_check_branch
      %103 = sbr.rel (0) target = $region73
    $region72: #{tpu_custom_call.1} parent=1 // pred_region
      %104 = dma.done [#allocation9], 16
    $region73: #{tpu_custom_call.1} parent=1 // pred_fallthru
      _
    // Predicated region
    $region74: #{tpu_custom_call.1} parent=1 // pred_check
      _
    $region75: #{tpu_custom_call.1} parent=1 // pred_check_branch
      %106 = sbr.rel (0) target = $region77
    $region76: #{tpu_custom_call.1} parent=1 // pred_region
      %107 = dma.done [#allocation9], 16
    $region77: #{tpu_custom_call.1} parent=1 // pred_fallthru
      _
    %v108 = vld [vmem:[#allocation2] sm:$0xff]
    %v109 = vld [vmem:[#allocation2 + $0x8] sm:$0xff]
    %vm110 = vcmask 523264
    %v111 = vsel %vm110, %v108, 0.0
    %112 = vadd.xlane.f32.xlu0 %v111
    %v113 = vpop.xlane.xlu0 %112
    %v114 = vsel %vm110, %v109, 0.0
    %115 = vadd.xlane.f32.xlu0 %v114
    %v116 = vpop.xlane.xlu0 %115
    %v117 = vrcp.pop 64.0
    %v118 = vmul.f32 %v113, %v117
    %v119 = vmul.f32 %v116, %v117
    %v120 = vsub.f32 %v108, %v118
    %v121 = vsub.f32 %v109, %v119
    %v122 = vmul.f32 %v120, %v120
    %v123 = vmul.f32 %v121, %v121
    %v124 = vsel %vm110, %v122, 0.0
    %125 = vadd.xlane.f32.xlu0 %v124
    %v126 = vpop.xlane.xlu0 %125
    %v127 = vsel %vm110, %v123, 0.0
    %128 = vadd.xlane.f32.xlu0 %v127
    %v129 = vpop.xlane.xlu0 %128
    %v130 = vmul.f32 %v126, %v117
    %v131 = vmul.f32 %v129, %v117
    %v132 = vadd.f32 %v130, 1e-05
    %v133 = vadd.f32 %v131, 1e-05
    %v134 = vrsqrt.pop %v132
    %v135 = vrsqrt.pop %v133
    %v136 = vmul.f32 %v120, %v134
    %v137 = vmul.f32 %v121, %v135
    %v138 = vld [vmem:[#allocation5] sm:$0x1]
    %v140 = vlaneseq
    %v141 = vshrl.u32 %v140, 7
    %v142 = vsub.s32 0, %v141
    %v143 = vrot.slane %v138, %v142
    %v145 = vmul.f32 %v136, %v143
    %v146 = vmul.f32 %v137, %v143
    %v147 = vld [vmem:[#allocation7] sm:$0x1]
    %v149 = vlaneseq
    %v150 = vshrl.u32 %v149, 7
    %v151 = vsub.s32 0, %v150
    %v152 = vrot.slane %v147, %v151
    %v154 = vadd.f32 %v145, %v152
    %v155 = vadd.f32 %v146, %v152
    %v156 = vld [vmem:[%s3] sm:$0xff]
    %v157 = vld [vmem:[%s3 + $0x8] sm:$0xff]
    %v158 = vld [vmem:[%s3 + $0x10] sm:$0xff]
    %v159 = vld [vmem:[%s3 + $0x18] sm:$0xff]
    %v160 = vld [vmem:[%s3 + $0x20] sm:$0xff]
    %v161 = vld [vmem:[%s3 + $0x28] sm:$0xff]
    %v162 = vld [vmem:[%s3 + $0x30] sm:$0xff]
    %v163 = vld [vmem:[%s3 + $0x38] sm:$0xff]
    %v164 = vld [vmem:[%s3 + $0x40] sm:$0xff]
    %v165 = vld [vmem:[%s3 + $0x48] sm:$0xff]
    %v166 = vld [vmem:[%s3 + $0x50] sm:$0xff]
    %v167 = vld [vmem:[%s3 + $0x58] sm:$0xff]
    %v168 = vld [vmem:[%s3 + $0x60] sm:$0xff]
    %v169 = vld [vmem:[%s3 + $0x68] sm:$0xff]
    %v170 = vld [vmem:[%s3 + $0x70] sm:$0xff]
    %v171 = vld [vmem:[%s3 + $0x78] sm:$0xff]
    %v172 = vld [vmem:[%s3 + $0x80] sm:$0xff]
    %v173 = vld [vmem:[%s3 + $0x88] sm:$0xff]
    %v174 = vld [vmem:[%s3 + $0x90] sm:$0xff]
    %v175 = vld [vmem:[%s3 + $0x98] sm:$0xff]
    %v176 = vld [vmem:[%s3 + $0xa0] sm:$0xff]
    %v177 = vld [vmem:[%s3 + $0xa8] sm:$0xff]
    %v178 = vld [vmem:[%s3 + $0xb0] sm:$0xff]
    %v179 = vld [vmem:[%s3 + $0xb8] sm:$0xff]
    %v180 = vld [vmem:[%s4] sm:$0x7]
    %v182 = vlaneseq
    %v183 = vshrl.u32 %v182, 7
    %v184 = vsub.s32 0, %v183
    %v185 = vrot.slane %v180, %v184
    %v186 = vlaneseq
    %v187 = vshrl.u32 %v186, 7
    %v188 = vsub.s32 1, %v187
    %v189 = vrot.slane %v180, %v188
    %v190 = vlaneseq
    %v191 = vshrl.u32 %v190, 7
    %v192 = vsub.s32 2, %v191
    %v193 = vrot.slane %v180, %v192
    %v198 = vsel %vm110, %v154, 0
    %v201 = vsel %vm110, %v155, 0
    %203 = vmatprep.subr.mxu0 %v157
    %204 = vmatpush1.msra.mxu0 %v156
    %205 = vmatprep.subr.mxu0 %v160
    %206 = vmatpush1.msra.mxu0 %v159
    %207 = vmatprep.subr.mxu0 %v163
    %208 = vmatpush1.msra.mxu0 %v162
    %209 = vmatprep.subr.mxu0 %v166
    %210 = vmatpush1.msra.mxu0 %v165
    %211 = vmatprep.subr.mxu0 %v169
    %212 = vmatpush1.msra.mxu0 %v168
    %213 = vmatprep.subr.mxu0 %v172
    %214 = vmatpush1.msra.mxu0 %v171
    %215 = vmatprep.subr.mxu0 %v175
    %216 = vmatpush1.msra.mxu0 %v174
    %217 = vmatprep.subr.mxu0 %v178
    %218 = vmatpush1.msra.mxu0 %v177
    %219 = vmatprep.subr.mxu0 0.0
    %220 = vmatpush1.msra.mxu0 0.0
    %221 = vmatprep.subr.mxu0 0.0
    %222 = vmatpush1.msra.mxu0 0.0
    %223 = vmatprep.subr.mxu0 0.0
    %224 = vmatpush1.msra.mxu0 0.0
    %225 = vmatprep.subr.mxu0 0.0
    %226 = vmatpush1.msra.mxu0 0.0
    %227 = vmatprep.subr.mxu0 0.0
    %228 = vmatpush1.msra.mxu0 0.0
    %229 = vmatprep.subr.mxu0 0.0
    %230 = vmatpush1.msra.mxu0 0.0
    %231 = vmatprep.subr.mxu0 0.0
    %232 = vmatpush1.msra.mxu0 0.0
    %233 = vmatprep.subr.mxu0 0.0
    %234 = vmatpush1.msra.mxu0 0.0
    %235 = vmatprep.subr.mxu0 0.0
    %236 = vmatpush1.msra.mxu0 0.0
    %237 = vmatprep.subr.mxu0 0.0
    %238 = vmatpush1.msra.mxu0 0.0
    %239 = vmatprep.subr.mxu0 0.0
    %240 = vmatpush1.msra.mxu0 0.0
    %241 = vmatprep.subr.mxu0 0.0
    %242 = vmatpush1.msra.mxu0 0.0
    %243 = vmatprep.subr.mxu0 0.0
    %244 = vmatpush1.msra.mxu0 0.0
    %245 = vmatprep.subr.mxu0 0.0
    %246 = vmatpush1.msra.mxu0 0.0
    %247 = vmatprep.subr.mxu0 0.0
    %248 = vmatpush1.msra.mxu0 0.0
    %249 = vmatprep.subr.mxu0 0.0
    %250 = vmatpush1.msra.mxu0 0.0
    %251 = vmatprep.subr.mxu0 0.0
    %252 = vmatpush1.msra.mxu0 0.0
    %253 = vmatprep.subr.mxu0 0.0
    %254 = vmatpush1.msra.mxu0 0.0
    %255 = vmatprep.subr.mxu0 0.0
    %256 = vmatpush1.msra.mxu0 0.0
    %257 = vmatprep.subr.mxu0 0.0
    %258 = vmatpush1.msra.mxu0 0.0
    %259 = vmatprep.subr.mxu0 0.0
    %260 = vmatpush1.msra.mxu0 0.0
    %261 = vmatprep.subr.mxu0 0.0
    %262 = vmatpush1.msra.mxu0 0.0
    %263 = vmatprep.subr.mxu0 0.0
    %264 = vmatpush1.msra.mxu0 0.0
    %265 = vmatprep.subr.mxu0 0.0
    %266 = vmatpush1.msra.mxu0 0.0
    %267 = vmatprep.mubr.f32.mxu0 0.0
    %268 = vmatmul.mubr.f32.gmra.mrb[0].mxu0 %v198
    %v269 = vpop.f32.mrb[0].mxu0
    %v270 = vadd.f32 %v185, %v269
    %v271 = vpop.f32.mrb[0].mxu0
    %v272 = vadd.f32 %v189, %v271
    %273 = vmatprep.mubr.f32.mxu0 0.0
    %274 = vmatmul.mubr.f32.gmra.mrb[0].mxu0 %v201
    %v275 = vpop.f32.mrb[0].mxu0
    %v276 = vadd.f32 %v185, %v275
    %v277 = vpop.f32.mrb[0].mxu0
    %v278 = vadd.f32 %v189, %v277
    %279 = vdwg.mxu0
    %280 = vmatprep.subr.mxu0 0.0
    %281 = vmatpush1.msra.mxu0 %v158
    %282 = vmatprep.subr.mxu0 0.0
    %283 = vmatpush1.msra.mxu0 %v161
    %284 = vmatprep.subr.mxu0 0.0
    %285 = vmatpush1.msra.mxu0 %v164
    %286 = vmatprep.subr.mxu0 0.0
    %287 = vmatpush1.msra.mxu0 %v167
    %288 = vmatprep.subr.mxu0 0.0
    %289 = vmatpush1.msra.mxu0 %v170
    %290 = vmatprep.subr.mxu0 0.0
    %291 = vmatpush1.msra.mxu0 %v173
    %292 = vmatprep.subr.mxu0 0.0
    %293 = vmatpush1.msra.mxu0 %v176
    %294 = vmatprep.subr.mxu0 0.0
    %295 = vmatpush1.msra.mxu0 %v179
    %296 = vmatprep.subr.mxu0 0.0
    %297 = vmatpush1.msra.mxu0 0.0
    %298 = vmatprep.subr.mxu0 0.0
    %299 = vmatpush1.msra.mxu0 0.0
    %300 = vmatprep.subr.mxu0 0.0
    %301 = vmatpush1.msra.mxu0 0.0
    %302 = vmatprep.subr.mxu0 0.0
    %303 = vmatpush1.msra.mxu0 0.0
    %304 = vmatprep.subr.mxu0 0.0
    %305 = vmatpush1.msra.mxu0 0.0
    %306 = vmatprep.subr.mxu0 0.0
    %307 = vmatpush1.msra.mxu0 0.0
    %308 = vmatprep.subr.mxu0 0.0
    %309 = vmatpush1.msra.mxu0 0.0
    %310 = vmatprep.subr.mxu0 0.0
    %311 = vmatpush1.msra.mxu0 0.0
    %312 = vmatprep.subr.mxu0 0.0
    %313 = vmatpush1.msra.mxu0 0.0
    %314 = vmatprep.subr.mxu0 0.0
    %315 = vmatpush1.msra.mxu0 0.0
    %316 = vmatprep.subr.mxu0 0.0
    %317 = vmatpush1.msra.mxu0 0.0
    %318 = vmatprep.subr.mxu0 0.0
    %319 = vmatpush1.msra.mxu0 0.0
    %320 = vmatprep.subr.mxu0 0.0
    %321 = vmatpush1.msra.mxu0 0.0
    %322 = vmatprep.subr.mxu0 0.0
    %323 = vmatpush1.msra.mxu0 0.0
    %324 = vmatprep.subr.mxu0 0.0
    %325 = vmatpush1.msra.mxu0 0.0
    %326 = vmatprep.subr.mxu0 0.0
    %327 = vmatpush1.msra.mxu0 0.0
    %328 = vmatprep.subr.mxu0 0.0
    %329 = vmatpush1.msra.mxu0 0.0
    %330 = vmatprep.subr.mxu0 0.0
    %331 = vmatpush1.msra.mxu0 0.0
    %332 = vmatprep.subr.mxu0 0.0
    %333 = vmatpush1.msra.mxu0 0.0
    %334 = vmatprep.subr.mxu0 0.0
    %335 = vmatpush1.msra.mxu0 0.0
    %336 = vmatprep.subr.mxu0 0.0
    %337 = vmatpush1.msra.mxu0 0.0
    %338 = vmatprep.subr.mxu0 0.0
    %339 = vmatpush1.msra.mxu0 0.0
    %340 = vmatprep.subr.mxu0 0.0
    %341 = vmatpush1.msra.mxu0 0.0
    %342 = vmatprep.subr.mxu0 0.0
    %343 = vmatpush1.msra.mxu0 0.0
    %344 = vmatprep.mubr.f32.mxu0 0.0
    %345 = vmatmul.mubr.f32.gmra.mrb[0].mxu0 %v198
    %v346 = vpop.f32.mrb[0].mxu0
    %v347 = vadd.f32 %v193, %v346
    %v348 = vpop.f32.mrb[0].mxu0
    %349 = vmatprep.mubr.f32.mxu0 0.0
    %350 = vmatmul.mubr.f32.gmra.mrb[0].mxu0 %v201
    %v351 = vpop.f32.mrb[0].mxu0
    %v352 = vadd.f32 %v193, %v351
    %v353 = vpop.f32.mrb[0].mxu0
    %354 = vdwg.mxu0
    %v355 = vld [vmem:[%s11] sm:$0xff]
    %v356 = vld [vmem:[%s11 + $0x8] sm:$0xff]
    %v357 = vld [vmem:[%s12] sm:$0xff]
    %v358 = vld [vmem:[%s12 + $0x8] sm:$0xff]
    %v359 = vmul.f32 %v270, %v355
    %v360 = vmul.f32 %v276, %v356
    %363 = vrot.lane.b32.xlu0 %v357, 64
    %v364 = vpop.permute.xlu0 %363
    %365 = vrot.lane.b32.xlu0 %v358, 64
    %v366 = vpop.permute.xlu0 %365
    %v369 = vmul.f32 %v270, %v364
    %v370 = vmul.f32 %v276, %v366
    %373 = vrot.lane.b32.xlu0 %v369, 64
    %v374 = vpop.permute.xlu0 %373
    %375 = vrot.lane.b32.xlu0 %v370, 64
    %v376 = vpop.permute.xlu0 %375
    %v379 = vadd.f32 %v359, %v374
    %v380 = vadd.f32 %v360, %v376
    %v381 = vmul.f32 %v272, %v355
    %v382 = vmul.f32 %v278, %v356
    %v383 = vmul.f32 %v272, %v364
    %v384 = vmul.f32 %v278, %v366
    %387 = vrot.lane.b32.xlu0 %v383, 64
    %v388 = vpop.permute.xlu0 %387
    %389 = vrot.lane.b32.xlu0 %v384, 64
    %v390 = vpop.permute.xlu0 %389
    %v393 = vadd.f32 %v381, %v388
    %v394 = vadd.f32 %v382, %v390
    %v395 = vld [vmem:[%s13] sm:$0xff]
    %vm396 = vcmask 130048
    %v398 = vsel %vm396, %v379, 0
    %v401 = vsel %vm396, %v393, 0
    %403 = vmatprep.subr.mxu0 0.0
    %404 = vmatpush1.xpose.msra.mxu0 %v401
    %405 = vmatprep.subr.mxu0 0.0
    %406 = vmatpush1.xpose.msra.mxu0 0.0
    %407 = vmatprep.subr.mxu0 0.0
    %408 = vmatpush1.xpose.msra.mxu0 0.0
    %409 = vmatprep.subr.mxu0 0.0
    %410 = vmatpush1.xpose.msra.mxu0 0.0
    %411 = vmatprep.subr.mxu0 0.0
    %412 = vmatpush1.xpose.msra.mxu0 0.0
    %413 = vmatprep.subr.mxu0 0.0
    %414 = vmatpush1.xpose.msra.mxu0 0.0
    %415 = vmatprep.subr.mxu0 0.0
    %416 = vmatpush1.xpose.msra.mxu0 0.0
    %417 = vmatprep.subr.mxu0 0.0
    %418 = vmatpush1.xpose.msra.mxu0 0.0
    %419 = vmatprep.subr.mxu0 0.0
    %420 = vmatpush1.xpose.msra.mxu0 0.0
    %421 = vmatprep.subr.mxu0 0.0
    %422 = vmatpush1.xpose.msra.mxu0 0.0
    %423 = vmatprep.subr.mxu0 0.0
    %424 = vmatpush1.xpose.msra.mxu0 0.0
    %425 = vmatprep.subr.mxu0 0.0
    %426 = vmatpush1.xpose.msra.mxu0 0.0
    %427 = vmatprep.subr.mxu0 0.0
    %428 = vmatpush1.xpose.msra.mxu0 0.0
    %429 = vmatprep.subr.mxu0 0.0
    %430 = vmatpush1.xpose.msra.mxu0 0.0
    %431 = vmatprep.subr.mxu0 0.0
    %432 = vmatpush1.xpose.msra.mxu0 0.0
    %433 = vmatprep.subr.mxu0 0.0
    %434 = vmatpush1.xpose.msra.mxu0 0.0
    %435 = vmatprep.subr.mxu0 0.0
    %436 = vmatpush1.xpose.msra.mxu0 0.0
    %437 = vmatprep.subr.mxu0 0.0
    %438 = vmatpush1.xpose.msra.mxu0 0.0
    %439 = vmatprep.subr.mxu0 0.0
    %440 = vmatpush1.xpose.msra.mxu0 0.0
    %441 = vmatprep.subr.mxu0 0.0
    %442 = vmatpush1.xpose.msra.mxu0 0.0
    %443 = vmatprep.subr.mxu0 0.0
    %444 = vmatpush1.xpose.msra.mxu0 0.0
    %445 = vmatprep.subr.mxu0 0.0
    %446 = vmatpush1.xpose.msra.mxu0 0.0
    %447 = vmatprep.subr.mxu0 0.0
    %448 = vmatpush1.xpose.msra.mxu0 0.0
    %449 = vmatprep.subr.mxu0 0.0
    %450 = vmatpush1.xpose.msra.mxu0 0.0
    %451 = vmatprep.subr.mxu0 0.0
    %452 = vmatpush1.xpose.msra.mxu0 0.0
    %453 = vmatprep.subr.mxu0 0.0
    %454 = vmatpush1.xpose.msra.mxu0 0.0
    %455 = vmatprep.subr.mxu0 0.0
    %456 = vmatpush1.xpose.msra.mxu0 0.0
    %457 = vmatprep.subr.mxu0 0.0
    %458 = vmatpush1.xpose.msra.mxu0 0.0
    %459 = vmatprep.subr.mxu0 0.0
    %460 = vmatpush1.xpose.msra.mxu0 0.0
    %461 = vmatprep.subr.mxu0 0.0
    %462 = vmatpush1.xpose.msra.mxu0 0.0
    %463 = vmatprep.subr.mxu0 0.0
    %464 = vmatpush1.xpose.msra.mxu0 0.0
    %465 = vmatprep.subr.mxu0 0.0
    %466 = vmatpush1.xpose.msra.mxu0 0.0
    %467 = vmatprep.mubr.f32.mxu0 0.0
    %468 = vmatmul.mubr.f32.gmra.mrb[0].mxu0 %v398
    %v469 = vpop.f32.mrb[0].mxu0
    %v470 = vadd.f32 %v395, %v469
    %v471 = vpop.f32.mrb[0].mxu0
    %472 = vdwg.mxu0
    %vm473 = vcmask 64512
    %v474 = vsel %vm473, %v470, -inf
    %475 = vmax.xlane.f32.xlu0 %v474
    %v476 = vpop.xlane.xlu0 %475
    %v477 = vsub.f32 %v470, %v476
    %v478 = vmul.f32 %v477, 1.442695
    %v479 = vpow.pop %v478
    %v480 = vsel %vm473, %v479, 0.0
    %481 = vadd.xlane.f32.xlu0 %v480
    %v482 = vpop.xlane.xlu0 %481
    %v483 = vrcp.pop %v482
    %v484 = vmul.f32 %v479, %v483
    %v486 = vsel %vm473, %v484, 0
    %488 = vmatprep.subr.mxu0 0.0
    %489 = vmatpush1.msra.mxu0 %v347
    %490 = vmatprep.subr.mxu0 0.0
    %491 = vmatpush1.msra.mxu0 0.0
    %492 = vmatprep.subr.mxu0 0.0
    %493 = vmatpush1.msra.mxu0 0.0
    %494 = vmatprep.subr.mxu0 0.0
    %495 = vmatpush1.msra.mxu0 0.0
    %496 = vmatprep.subr.mxu0 0.0
    %497 = vmatpush1.msra.mxu0 0.0
    %498 = vmatprep.subr.mxu0 0.0
    %499 = vmatpush1.msra.mxu0 0.0
    %500 = vmatprep.subr.mxu0 0.0
    %501 = vmatpush1.msra.mxu0 0.0
    %502 = vmatprep.subr.mxu0 0.0
    %503 = vmatpush1.msra.mxu0 0.0
    %504 = vmatprep.subr.mxu0 0.0
    %505 = vmatpush1.msra.mxu0 0.0
    %506 = vmatprep.subr.mxu0 0.0
    %507 = vmatpush1.msra.mxu0 0.0
    %508 = vmatprep.subr.mxu0 0.0
    %509 = vmatpush1.msra.mxu0 0.0
    %510 = vmatprep.subr.mxu0 0.0
    %511 = vmatpush1.msra.mxu0 0.0
    %512 = vmatprep.subr.mxu0 0.0
    %513 = vmatpush1.msra.mxu0 0.0
    %514 = vmatprep.subr.mxu0 0.0
    %515 = vmatpush1.msra.mxu0 0.0
    %516 = vmatprep.subr.mxu0 0.0
    %517 = vmatpush1.msra.mxu0 0.0
    %518 = vmatprep.subr.mxu0 0.0
    %519 = vmatpush1.msra.mxu0 0.0
    %520 = vmatprep.subr.mxu0 0.0
    %521 = vmatpush1.msra.mxu0 0.0
    %522 = vmatprep.subr.mxu0 0.0
    %523 = vmatpush1.msra.mxu0 0.0
    %524 = vmatprep.subr.mxu0 0.0
    %525 = vmatpush1.msra.mxu0 0.0
    %526 = vmatprep.subr.mxu0 0.0
    %527 = vmatpush1.msra.mxu0 0.0
    %528 = vmatprep.subr.mxu0 0.0
    %529 = vmatpush1.msra.mxu0 0.0
    %530 = vmatprep.subr.mxu0 0.0
    %531 = vmatpush1.msra.mxu0 0.0
    %532 = vmatprep.subr.mxu0 0.0
    %533 = vmatpush1.msra.mxu0 0.0
    %534 = vmatprep.subr.mxu0 0.0
    %535 = vmatpush1.msra.mxu0 0.0
    %536 = vmatprep.subr.mxu0 0.0
    %537 = vmatpush1.msra.mxu0 0.0
    %538 = vmatprep.subr.mxu0 0.0
    %539 = vmatpush1.msra.mxu0 0.0
    %540 = vmatprep.subr.mxu0 0.0
    %541 = vmatpush1.msra.mxu0 0.0
    %542 = vmatprep.subr.mxu0 0.0
    %543 = vmatpush1.msra.mxu0 0.0
    %544 = vmatprep.subr.mxu0 0.0
    %545 = vmatpush1.msra.mxu0 0.0
    %546 = vmatprep.subr.mxu0 0.0
    %547 = vmatpush1.msra.mxu0 0.0
    %548 = vmatprep.subr.mxu0 0.0
    %549 = vmatpush1.msra.mxu0 0.0
    %550 = vmatprep.subr.mxu0 0.0
    %551 = vmatpush1.msra.mxu0 0.0
    %552 = vmatprep.mubr.f32.mxu0 0.0
    %553 = vmatmul.mubr.f32.gmra.mrb[0].mxu0 %v486
    %v554 = vpop.f32.mrb[0].mxu0
    %v555 = vadd.f32 0.0, %v554
    %v556 = vpop.f32.mrb[0].mxu0
    %557 = vdwg.mxu0
    %558 = vrot.lane.b32.xlu0 %v379, 112
    %v559 = vpop.permute.xlu0 %558
    %560 = vrot.lane.b32.xlu0 %v393, 112
    %v561 = vpop.permute.xlu0 %560
    %v562 = vsel %vm396, %v559, 0
    %v564 = vsel %vm396, %v561, 0
    %566 = vmatprep.subr.mxu0 0.0
    %567 = vmatpush1.xpose.msra.mxu0 %v564
    %568 = vmatprep.subr.mxu0 0.0
    %569 = vmatpush1.xpose.msra.mxu0 0.0
    %570 = vmatprep.subr.mxu0 0.0
    %571 = vmatpush1.xpose.msra.mxu0 0.0
    %572 = vmatprep.subr.mxu0 0.0
    %573 = vmatpush1.xpose.msra.mxu0 0.0
    %574 = vmatprep.subr.mxu0 0.0
    %575 = vmatpush1.xpose.msra.mxu0 0.0
    %576 = vmatprep.subr.mxu0 0.0
    %577 = vmatpush1.xpose.msra.mxu0 0.0
    %578 = vmatprep.subr.mxu0 0.0
    %579 = vmatpush1.xpose.msra.mxu0 0.0
    %580 = vmatprep.subr.mxu0 0.0
    %581 = vmatpush1.xpose.msra.mxu0 0.0
    %582 = vmatprep.subr.mxu0 0.0
    %583 = vmatpush1.xpose.msra.mxu0 0.0
    %584 = vmatprep.subr.mxu0 0.0
    %585 = vmatpush1.xpose.msra.mxu0 0.0
    %586 = vmatprep.subr.mxu0 0.0
    %587 = vmatpush1.xpose.msra.mxu0 0.0
    %588 = vmatprep.subr.mxu0 0.0
    %589 = vmatpush1.xpose.msra.mxu0 0.0
    %590 = vmatprep.subr.mxu0 0.0
    %591 = vmatpush1.xpose.msra.mxu0 0.0
    %592 = vmatprep.subr.mxu0 0.0
    %593 = vmatpush1.xpose.msra.mxu0 0.0
    %594 = vmatprep.subr.mxu0 0.0
    %595 = vmatpush1.xpose.msra.mxu0 0.0
    %596 = vmatprep.subr.mxu0 0.0
    %597 = vmatpush1.xpose.msra.mxu0 0.0
    %598 = vmatprep.subr.mxu0 0.0
    %599 = vmatpush1.xpose.msra.mxu0 0.0
    %600 = vmatprep.subr.mxu0 0.0
    %601 = vmatpush1.xpose.msra.mxu0 0.0
    %602 = vmatprep.subr.mxu0 0.0
    %603 = vmatpush1.xpose.msra.mxu0 0.0
    %604 = vmatprep.subr.mxu0 0.0
    %605 = vmatpush1.xpose.msra.mxu0 0.0
    %606 = vmatprep.subr.mxu0 0.0
    %607 = vmatpush1.xpose.msra.mxu0 0.0
    %608 = vmatprep.subr.mxu0 0.0
    %609 = vmatpush1.xpose.msra.mxu0 0.0
    %610 = vmatprep.subr.mxu0 0.0
    %611 = vmatpush1.xpose.msra.mxu0 0.0
    %612 = vmatprep.subr.mxu0 0.0
    %613 = vmatpush1.xpose.msra.mxu0 0.0
    %614 = vmatprep.subr.mxu0 0.0
    %615 = vmatpush1.xpose.msra.mxu0 0.0
    %616 = vmatprep.subr.mxu0 0.0
    %617 = vmatpush1.xpose.msra.mxu0 0.0
    %618 = vmatprep.subr.mxu0 0.0
    %619 = vmatpush1.xpose.msra.mxu0 0.0
    %620 = vmatprep.subr.mxu0 0.0
    %621 = vmatpush1.xpose.msra.mxu0 0.0
    %622 = vmatprep.subr.mxu0 0.0
    %623 = vmatpush1.xpose.msra.mxu0 0.0
    %624 = vmatprep.subr.mxu0 0.0
    %625 = vmatpush1.xpose.msra.mxu0 0.0
    %626 = vmatprep.subr.mxu0 0.0
    %627 = vmatpush1.xpose.msra.mxu0 0.0
    %628 = vmatprep.subr.mxu0 0.0
    %629 = vmatpush1.xpose.msra.mxu0 0.0
    %630 = vmatprep.mubr.f32.mxu0 0.0
    %631 = vmatmul.mubr.f32.gmra.mrb[0].mxu0 %v562
    %v632 = vpop.f32.mrb[0].mxu0
    %v633 = vadd.f32 %v395, %v632
    %v634 = vpop.f32.mrb[0].mxu0
    %635 = vdwg.mxu0
    %v636 = vsel %vm473, %v633, -inf
    %637 = vmax.xlane.f32.xlu0 %v636
    %v638 = vpop.xlane.xlu0 %637
    %v639 = vsub.f32 %v633, %v638
    %v640 = vmul.f32 %v639, 1.442695
    %v641 = vpow.pop %v640
    %v642 = vsel %vm473, %v641, 0.0
    %643 = vadd.xlane.f32.xlu0 %v642
    %v644 = vpop.xlane.xlu0 %643
    %v645 = vrcp.pop %v644
    %v646 = vmul.f32 %v641, %v645
    %648 = vrot.lane.b32.xlu0 %v347, 112
    %v649 = vpop.permute.xlu0 %648
    %v652 = vsel %vm473, %v646, 0
    %654 = vmatprep.subr.mxu0 0.0
    %655 = vmatpush1.msra.mxu0 %v649
    %656 = vmatprep.subr.mxu0 0.0
    %657 = vmatpush1.msra.mxu0 0.0
    %658 = vmatprep.subr.mxu0 0.0
    %659 = vmatpush1.msra.mxu0 0.0
    %660 = vmatprep.subr.mxu0 0.0
    %661 = vmatpush1.msra.mxu0 0.0
    %662 = vmatprep.subr.mxu0 0.0
    %663 = vmatpush1.msra.mxu0 0.0
    %664 = vmatprep.subr.mxu0 0.0
    %665 = vmatpush1.msra.mxu0 0.0
    %666 = vmatprep.subr.mxu0 0.0
    %667 = vmatpush1.msra.mxu0 0.0
    %668 = vmatprep.subr.mxu0 0.0
    %669 = vmatpush1.msra.mxu0 0.0
    %670 = vmatprep.subr.mxu0 0.0
    %671 = vmatpush1.msra.mxu0 0.0
    %672 = vmatprep.subr.mxu0 0.0
    %673 = vmatpush1.msra.mxu0 0.0
    %674 = vmatprep.subr.mxu0 0.0
    %675 = vmatpush1.msra.mxu0 0.0
    %676 = vmatprep.subr.mxu0 0.0
    %677 = vmatpush1.msra.mxu0 0.0
    %678 = vmatprep.subr.mxu0 0.0
    %679 = vmatpush1.msra.mxu0 0.0
    %680 = vmatprep.subr.mxu0 0.0
    %681 = vmatpush1.msra.mxu0 0.0
    %682 = vmatprep.subr.mxu0 0.0
    %683 = vmatpush1.msra.mxu0 0.0
    %684 = vmatprep.subr.mxu0 0.0
    %685 = vmatpush1.msra.mxu0 0.0
    %686 = vmatprep.subr.mxu0 0.0
    %687 = vmatpush1.msra.mxu0 0.0
    %688 = vmatprep.subr.mxu0 0.0
    %689 = vmatpush1.msra.mxu0 0.0
    %690 = vmatprep.subr.mxu0 0.0
    %691 = vmatpush1.msra.mxu0 0.0
    %692 = vmatprep.subr.mxu0 0.0
    %693 = vmatpush1.msra.mxu0 0.0
    %694 = vmatprep.subr.mxu0 0.0
    %695 = vmatpush1.msra.mxu0 0.0
    %696 = vmatprep.subr.mxu0 0.0
    %697 = vmatpush1.msra.mxu0 0.0
    %698 = vmatprep.subr.mxu0 0.0
    %699 = vmatpush1.msra.mxu0 0.0
    %700 = vmatprep.subr.mxu0 0.0
    %701 = vmatpush1.msra.mxu0 0.0
    %702 = vmatprep.subr.mxu0 0.0
    %703 = vmatpush1.msra.mxu0 0.0
    %704 = vmatprep.subr.mxu0 0.0
    %705 = vmatpush1.msra.mxu0 0.0
    %706 = vmatprep.subr.mxu0 0.0
    %707 = vmatpush1.msra.mxu0 0.0
    %708 = vmatprep.subr.mxu0 0.0
    %709 = vmatpush1.msra.mxu0 0.0
    %710 = vmatprep.subr.mxu0 0.0
    %711 = vmatpush1.msra.mxu0 0.0
    %712 = vmatprep.subr.mxu0 0.0
    %713 = vmatpush1.msra.mxu0 0.0
    %714 = vmatprep.subr.mxu0 0.0
    %715 = vmatpush1.msra.mxu0 0.0
    %716 = vmatprep.subr.mxu0 0.0
    %717 = vmatpush1.msra.mxu0 0.0
    %718 = vmatprep.mubr.f32.mxu0 0.0
    %719 = vmatmul.mubr.f32.gmra.mrb[0].mxu0 %v652
    %v720 = vpop.f32.mrb[0].mxu0
    %v721 = vadd.f32 0.0, %v720
    %v722 = vpop.f32.mrb[0].mxu0
    %723 = vdwg.mxu0
    %724 = vrot.lane.b32.xlu0 %v379, 96
    %v725 = vpop.permute.xlu0 %724
    %726 = vrot.lane.b32.xlu0 %v393, 96
    %v727 = vpop.permute.xlu0 %726
    %v728 = vsel %vm396, %v725, 0
    %v730 = vsel %vm396, %v727, 0
    %732 = vmatprep.subr.mxu0 0.0
    %733 = vmatpush1.xpose.msra.mxu0 %v730
    %734 = vmatprep.subr.mxu0 0.0
    %735 = vmatpush1.xpose.msra.mxu0 0.0
    %736 = vmatprep.subr.mxu0 0.0
    %737 = vmatpush1.xpose.msra.mxu0 0.0
    %738 = vmatprep.subr.mxu0 0.0
    %739 = vmatpush1.xpose.msra.mxu0 0.0
    %740 = vmatprep.subr.mxu0 0.0
    %741 = vmatpush1.xpose.msra.mxu0 0.0
    %742 = vmatprep.subr.mxu0 0.0
    %743 = vmatpush1.xpose.msra.mxu0 0.0
    %744 = vmatprep.subr.mxu0 0.0
    %745 = vmatpush1.xpose.msra.mxu0 0.0
    %746 = vmatprep.subr.mxu0 0.0
    %747 = vmatpush1.xpose.msra.mxu0 0.0
    %748 = vmatprep.subr.mxu0 0.0
    %749 = vmatpush1.xpose.msra.mxu0 0.0
    %750 = vmatprep.subr.mxu0 0.0
    %751 = vmatpush1.xpose.msra.mxu0 0.0
    %752 = vmatprep.subr.mxu0 0.0
    %753 = vmatpush1.xpose.msra.mxu0 0.0
    %754 = vmatprep.subr.mxu0 0.0
    %755 = vmatpush1.xpose.msra.mxu0 0.0
    %756 = vmatprep.subr.mxu0 0.0
    %757 = vmatpush1.xpose.msra.mxu0 0.0
    %758 = vmatprep.subr.mxu0 0.0
    %759 = vmatpush1.xpose.msra.mxu0 0.0
    %760 = vmatprep.subr.mxu0 0.0
    %761 = vmatpush1.xpose.msra.mxu0 0.0
    %762 = vmatprep.subr.mxu0 0.0
    %763 = vmatpush1.xpose.msra.mxu0 0.0
    %764 = vmatprep.subr.mxu0 0.0
    %765 = vmatpush1.xpose.msra.mxu0 0.0
    %766 = vmatprep.subr.mxu0 0.0
    %767 = vmatpush1.xpose.msra.mxu0 0.0
    %768 = vmatprep.subr.mxu0 0.0
    %769 = vmatpush1.xpose.msra.mxu0 0.0
    %770 = vmatprep.subr.mxu0 0.0
    %771 = vmatpush1.xpose.msra.mxu0 0.0
    %772 = vmatprep.subr.mxu0 0.0
    %773 = vmatpush1.xpose.msra.mxu0 0.0
    %774 = vmatprep.subr.mxu0 0.0
    %775 = vmatpush1.xpose.msra.mxu0 0.0
    %776 = vmatprep.subr.mxu0 0.0
    %777 = vmatpush1.xpose.msra.mxu0 0.0
    %778 = vmatprep.subr.mxu0 0.0
    %779 = vmatpush1.xpose.msra.mxu0 0.0
    %780 = vmatprep.subr.mxu0 0.0
    %781 = vmatpush1.xpose.msra.mxu0 0.0
    %782 = vmatprep.subr.mxu0 0.0
    %783 = vmatpush1.xpose.msra.mxu0 0.0
    %784 = vmatprep.subr.mxu0 0.0
    %785 = vmatpush1.xpose.msra.mxu0 0.0
    %786 = vmatprep.subr.mxu0 0.0
    %787 = vmatpush1.xpose.msra.mxu0 0.0
    %788 = vmatprep.subr.mxu0 0.0
    %789 = vmatpush1.xpose.msra.mxu0 0.0
    %790 = vmatprep.subr.mxu0 0.0
    %791 = vmatpush1.xpose.msra.mxu0 0.0
    %792 = vmatprep.subr.mxu0 0.0
    %793 = vmatpush1.xpose.msra.mxu0 0.0
    %794 = vmatprep.subr.mxu0 0.0
    %795 = vmatpush1.xpose.msra.mxu0 0.0
    %796 = vmatprep.mubr.f32.mxu0 0.0
    %797 = vmatmul.mubr.f32.gmra.mrb[0].mxu0 %v728
    %v798 = vpop.f32.mrb[0].mxu0
    %v799 = vadd.f32 %v395, %v798
    %v800 = vpop.f32.mrb[0].mxu0
    %801 = vdwg.mxu0
    %v802 = vsel %vm473, %v799, -inf
    %803 = vmax.xlane.f32.xlu0 %v802
    %v804 = vpop.xlane.xlu0 %803
    %v805 = vsub.f32 %v799, %v804
    %v806 = vmul.f32 %v805, 1.442695
    %v807 = vpow.pop %v806
    %v808 = vsel %vm473, %v807, 0.0
    %809 = vadd.xlane.f32.xlu0 %v808
    %v810 = vpop.xlane.xlu0 %809
    %v811 = vrcp.pop %v810
    %v812 = vmul.f32 %v807, %v811
    %813 = vrot.lane.b32.xlu0 %v347, 96
    %v814 = vpop.permute.xlu0 %813
    %v817 = vsel %vm473, %v812, 0
    %819 = vmatprep.subr.mxu0 0.0
    %820 = vmatpush1.msra.mxu0 %v814
    %821 = vmatprep.subr.mxu0 0.0
    %822 = vmatpush1.msra.mxu0 0.0
    %823 = vmatprep.subr.mxu0 0.0
    %824 = vmatpush1.msra.mxu0 0.0
    %825 = vmatprep.subr.mxu0 0.0
    %826 = vmatpush1.msra.mxu0 0.0
    %827 = vmatprep.subr.mxu0 0.0
    %828 = vmatpush1.msra.mxu0 0.0
    %829 = vmatprep.subr.mxu0 0.0
    %830 = vmatpush1.msra.mxu0 0.0
    %831 = vmatprep.subr.mxu0 0.0
    %832 = vmatpush1.msra.mxu0 0.0
    %833 = vmatprep.subr.mxu0 0.0
    %834 = vmatpush1.msra.mxu0 0.0
    %835 = vmatprep.subr.mxu0 0.0
    %836 = vmatpush1.msra.mxu0 0.0
    %837 = vmatprep.subr.mxu0 0.0
    %838 = vmatpush1.msra.mxu0 0.0
    %839 = vmatprep.subr.mxu0 0.0
    %840 = vmatpush1.msra.mxu0 0.0
    %841 = vmatprep.subr.mxu0 0.0
    %842 = vmatpush1.msra.mxu0 0.0
    %843 = vmatprep.subr.mxu0 0.0
    %844 = vmatpush1.msra.mxu0 0.0
    %845 = vmatprep.subr.mxu0 0.0
    %846 = vmatpush1.msra.mxu0 0.0
    %847 = vmatprep.subr.mxu0 0.0
    %848 = vmatpush1.msra.mxu0 0.0
    %849 = vmatprep.subr.mxu0 0.0
    %850 = vmatpush1.msra.mxu0 0.0
    %851 = vmatprep.subr.mxu0 0.0
    %852 = vmatpush1.msra.mxu0 0.0
    %853 = vmatprep.subr.mxu0 0.0
    %854 = vmatpush1.msra.mxu0 0.0
    %855 = vmatprep.subr.mxu0 0.0
    %856 = vmatpush1.msra.mxu0 0.0
    %857 = vmatprep.subr.mxu0 0.0
    %858 = vmatpush1.msra.mxu0 0.0
    %859 = vmatprep.subr.mxu0 0.0
    %860 = vmatpush1.msra.mxu0 0.0
    %861 = vmatprep.subr.mxu0 0.0
    %862 = vmatpush1.msra.mxu0 0.0
    %863 = vmatprep.subr.mxu0 0.0
    %864 = vmatpush1.msra.mxu0 0.0
    %865 = vmatprep.subr.mxu0 0.0
    %866 = vmatpush1.msra.mxu0 0.0
    %867 = vmatprep.subr.mxu0 0.0
    %868 = vmatpush1.msra.mxu0 0.0
    %869 = vmatprep.subr.mxu0 0.0
    %870 = vmatpush1.msra.mxu0 0.0
    %871 = vmatprep.subr.mxu0 0.0
    %872 = vmatpush1.msra.mxu0 0.0
    %873 = vmatprep.subr.mxu0 0.0
    %874 = vmatpush1.msra.mxu0 0.0
    %875 = vmatprep.subr.mxu0 0.0
    %876 = vmatpush1.msra.mxu0 0.0
    %877 = vmatprep.subr.mxu0 0.0
    %878 = vmatpush1.msra.mxu0 0.0
    %879 = vmatprep.subr.mxu0 0.0
    %880 = vmatpush1.msra.mxu0 0.0
    %881 = vmatprep.subr.mxu0 0.0
    %882 = vmatpush1.msra.mxu0 0.0
    %883 = vmatprep.mubr.f32.mxu0 0.0
    %884 = vmatmul.mubr.f32.gmra.mrb[0].mxu0 %v817
    %v885 = vpop.f32.mrb[0].mxu0
    %v886 = vadd.f32 0.0, %v885
    %v887 = vpop.f32.mrb[0].mxu0
    %888 = vdwg.mxu0
    %889 = vrot.lane.b32.xlu0 %v379, 80
    %v890 = vpop.permute.xlu0 %889
    %891 = vrot.lane.b32.xlu0 %v393, 80
    %v892 = vpop.permute.xlu0 %891
    %v893 = vsel %vm396, %v890, 0
    %v895 = vsel %vm396, %v892, 0
    %897 = vmatprep.subr.mxu0 0.0
    %898 = vmatpush1.xpose.msra.mxu0 %v895
    %899 = vmatprep.subr.mxu0 0.0
    %900 = vmatpush1.xpose.msra.mxu0 0.0
    %901 = vmatprep.subr.mxu0 0.0
    %902 = vmatpush1.xpose.msra.mxu0 0.0
    %903 = vmatprep.subr.mxu0 0.0
    %904 = vmatpush1.xpose.msra.mxu0 0.0
    %905 = vmatprep.subr.mxu0 0.0
    %906 = vmatpush1.xpose.msra.mxu0 0.0
    %907 = vmatprep.subr.mxu0 0.0
    %908 = vmatpush1.xpose.msra.mxu0 0.0
    %909 = vmatprep.subr.mxu0 0.0
    %910 = vmatpush1.xpose.msra.mxu0 0.0
    %911 = vmatprep.subr.mxu0 0.0
    %912 = vmatpush1.xpose.msra.mxu0 0.0
    %913 = vmatprep.subr.mxu0 0.0
    %914 = vmatpush1.xpose.msra.mxu0 0.0
    %915 = vmatprep.subr.mxu0 0.0
    %916 = vmatpush1.xpose.msra.mxu0 0.0
    %917 = vmatprep.subr.mxu0 0.0
    %918 = vmatpush1.xpose.msra.mxu0 0.0
    %919 = vmatprep.subr.mxu0 0.0
    %920 = vmatpush1.xpose.msra.mxu0 0.0
    %921 = vmatprep.subr.mxu0 0.0
    %922 = vmatpush1.xpose.msra.mxu0 0.0
    %923 = vmatprep.subr.mxu0 0.0
    %924 = vmatpush1.xpose.msra.mxu0 0.0
    %925 = vmatprep.subr.mxu0 0.0
    %926 = vmatpush1.xpose.msra.mxu0 0.0
    %927 = vmatprep.subr.mxu0 0.0
    %928 = vmatpush1.xpose.msra.mxu0 0.0
    %929 = vmatprep.subr.mxu0 0.0
    %930 = vmatpush1.xpose.msra.mxu0 0.0
    %931 = vmatprep.subr.mxu0 0.0
    %932 = vmatpush1.xpose.msra.mxu0 0.0
    %933 = vmatprep.subr.mxu0 0.0
    %934 = vmatpush1.xpose.msra.mxu0 0.0
    %935 = vmatprep.subr.mxu0 0.0
    %936 = vmatpush1.xpose.msra.mxu0 0.0
    %937 = vmatprep.subr.mxu0 0.0
    %938 = vmatpush1.xpose.msra.mxu0 0.0
    %939 = vmatprep.subr.mxu0 0.0
    %940 = vmatpush1.xpose.msra.mxu0 0.0
    %941 = vmatprep.subr.mxu0 0.0
    %942 = vmatpush1.xpose.msra.mxu0 0.0
    %943 = vmatprep.subr.mxu0 0.0
    %944 = vmatpush1.xpose.msra.mxu0 0.0
    %945 = vmatprep.subr.mxu0 0.0
    %946 = vmatpush1.xpose.msra.mxu0 0.0
    %947 = vmatprep.subr.mxu0 0.0
    %948 = vmatpush1.xpose.msra.mxu0 0.0
    %949 = vmatprep.subr.mxu0 0.0
    %950 = vmatpush1.xpose.msra.mxu0 0.0
    %951 = vmatprep.subr.mxu0 0.0
    %952 = vmatpush1.xpose.msra.mxu0 0.0
    %953 = vmatprep.subr.mxu0 0.0
    %954 = vmatpush1.xpose.msra.mxu0 0.0
    %955 = vmatprep.subr.mxu0 0.0
    %956 = vmatpush1.xpose.msra.mxu0 0.0
    %957 = vmatprep.subr.mxu0 0.0
    %958 = vmatpush1.xpose.msra.mxu0 0.0
    %959 = vmatprep.subr.mxu0 0.0
    %960 = vmatpush1.xpose.msra.mxu0 0.0
    %961 = vmatprep.mubr.f32.mxu0 0.0
    %962 = vmatmul.mubr.f32.gmra.mrb[0].mxu0 %v893
    %v963 = vpop.f32.mrb[0].mxu0
    %v964 = vadd.f32 %v395, %v963
    %v965 = vpop.f32.mrb[0].mxu0
    %966 = vdwg.mxu0
    %v967 = vsel %vm473, %v964, -inf
    %968 = vmax.xlane.f32.xlu0 %v967
    %v969 = vpop.xlane.xlu0 %968
    %v970 = vsub.f32 %v964, %v969
    %v971 = vmul.f32 %v970, 1.442695
    %v972 = vpow.pop %v971
    %v973 = vsel %vm473, %v972, 0.0
    %974 = vadd.xlane.f32.xlu0 %v973
    %v975 = vpop.xlane.xlu0 %974
    %v976 = vrcp.pop %v975
    %v977 = vmul.f32 %v972, %v976
    %978 = vrot.lane.b32.xlu0 %v347, 80
    %v979 = vpop.permute.xlu0 %978
    %v982 = vsel %vm473, %v977, 0
    %984 = vmatprep.subr.mxu0 0.0
    %985 = vmatpush1.msra.mxu0 %v979
    %986 = vmatprep.subr.mxu0 0.0
    %987 = vmatpush1.msra.mxu0 0.0
    %988 = vmatprep.subr.mxu0 0.0
    %989 = vmatpush1.msra.mxu0 0.0
    %990 = vmatprep.subr.mxu0 0.0
    %991 = vmatpush1.msra.mxu0 0.0
    %992 = vmatprep.subr.mxu0 0.0
    %993 = vmatpush1.msra.mxu0 0.0
    %994 = vmatprep.subr.mxu0 0.0
    %995 = vmatpush1.msra.mxu0 0.0
    %996 = vmatprep.subr.mxu0 0.0
    %997 = vmatpush1.msra.mxu0 0.0
    %998 = vmatprep.subr.mxu0 0.0
    %999 = vmatpush1.msra.mxu0 0.0
    %1000 = vmatprep.subr.mxu0 0.0
    %1001 = vmatpush1.msra.mxu0 0.0
    %1002 = vmatprep.subr.mxu0 0.0
    %1003 = vmatpush1.msra.mxu0 0.0
    %1004 = vmatprep.subr.mxu0 0.0
    %1005 = vmatpush1.msra.mxu0 0.0
    %1006 = vmatprep.subr.mxu0 0.0
    %1007 = vmatpush1.msra.mxu0 0.0
    %1008 = vmatprep.subr.mxu0 0.0
    %1009 = vmatpush1.msra.mxu0 0.0
    %1010 = vmatprep.subr.mxu0 0.0
    %1011 = vmatpush1.msra.mxu0 0.0
    %1012 = vmatprep.subr.mxu0 0.0
    %1013 = vmatpush1.msra.mxu0 0.0
    %1014 = vmatprep.subr.mxu0 0.0
    %1015 = vmatpush1.msra.mxu0 0.0
    %1016 = vmatprep.subr.mxu0 0.0
    %1017 = vmatpush1.msra.mxu0 0.0
    %1018 = vmatprep.subr.mxu0 0.0
    %1019 = vmatpush1.msra.mxu0 0.0
    %1020 = vmatprep.subr.mxu0 0.0
    %1021 = vmatpush1.msra.mxu0 0.0
    %1022 = vmatprep.subr.mxu0 0.0
    %1023 = vmatpush1.msra.mxu0 0.0
    %1024 = vmatprep.subr.mxu0 0.0
    %1025 = vmatpush1.msra.mxu0 0.0
    %1026 = vmatprep.subr.mxu0 0.0
    %1027 = vmatpush1.msra.mxu0 0.0
    %1028 = vmatprep.subr.mxu0 0.0
    %1029 = vmatpush1.msra.mxu0 0.0
    %1030 = vmatprep.subr.mxu0 0.0
    %1031 = vmatpush1.msra.mxu0 0.0
    %1032 = vmatprep.subr.mxu0 0.0
    %1033 = vmatpush1.msra.mxu0 0.0
    %1034 = vmatprep.subr.mxu0 0.0
    %1035 = vmatpush1.msra.mxu0 0.0
    %1036 = vmatprep.subr.mxu0 0.0
    %1037 = vmatpush1.msra.mxu0 0.0
    %1038 = vmatprep.subr.mxu0 0.0
    %1039 = vmatpush1.msra.mxu0 0.0
    %1040 = vmatprep.subr.mxu0 0.0
    %1041 = vmatpush1.msra.mxu0 0.0
    %1042 = vmatprep.subr.mxu0 0.0
    %1043 = vmatpush1.msra.mxu0 0.0
    %1044 = vmatprep.subr.mxu0 0.0
    %1045 = vmatpush1.msra.mxu0 0.0
    %1046 = vmatprep.subr.mxu0 0.0
    %1047 = vmatpush1.msra.mxu0 0.0
    %1048 = vmatprep.mubr.f32.mxu0 0.0
    %1049 = vmatmul.mubr.f32.gmra.mrb[0].mxu0 %v982
    %v1050 = vpop.f32.mrb[0].mxu0
    %v1051 = vadd.f32 0.0, %v1050
    %v1052 = vpop.f32.mrb[0].mxu0
    %1053 = vdwg.mxu0
    %1055 = vrot.lane.b32.xlu0 %v721, 16
    %v1056 = vpop.permute.xlu0 %1055
    %1059 = vrot.lane.b32.xlu0 %v886, 32
    %v1060 = vpop.permute.xlu0 %1059
    %1063 = vrot.lane.b32.xlu0 %v1051, 48
    %v1064 = vpop.permute.xlu0 %1063
    %v1066 = vsel %vm396, %v555, %v1056
    %vm1067 = vcmask 261120
    %v1068 = vsel %vm1067, %v1066, %v1060
    %vm1069 = vcmask 392192
    %v1070 = vsel %vm1069, %v1068, %v1064
    %v1072 = vsel %vm396, %v380, 0
    %v1075 = vsel %vm396, %v394, 0
    %1077 = vmatprep.subr.mxu0 0.0
    %1078 = vmatpush1.xpose.msra.mxu0 %v1075
    %1079 = vmatprep.subr.mxu0 0.0
    %1080 = vmatpush1.xpose.msra.mxu0 0.0
    %1081 = vmatprep.subr.mxu0 0.0
    %1082 = vmatpush1.xpose.msra.mxu0 0.0
    %1083 = vmatprep.subr.mxu0 0.0
    %1084 = vmatpush1.xpose.msra.mxu0 0.0
    %1085 = vmatprep.subr.mxu0 0.0
    %1086 = vmatpush1.xpose.msra.mxu0 0.0
    %1087 = vmatprep.subr.mxu0 0.0
    %1088 = vmatpush1.xpose.msra.mxu0 0.0
    %1089 = vmatprep.subr.mxu0 0.0
    %1090 = vmatpush1.xpose.msra.mxu0 0.0
    %1091 = vmatprep.subr.mxu0 0.0
    %1092 = vmatpush1.xpose.msra.mxu0 0.0
    %1093 = vmatprep.subr.mxu0 0.0
    %1094 = vmatpush1.xpose.msra.mxu0 0.0
    %1095 = vmatprep.subr.mxu0 0.0
    %1096 = vmatpush1.xpose.msra.mxu0 0.0
    %1097 = vmatprep.subr.mxu0 0.0
    %1098 = vmatpush1.xpose.msra.mxu0 0.0
    %1099 = vmatprep.subr.mxu0 0.0
    %1100 = vmatpush1.xpose.msra.mxu0 0.0
    %1101 = vmatprep.subr.mxu0 0.0
    %1102 = vmatpush1.xpose.msra.mxu0 0.0
    %1103 = vmatprep.subr.mxu0 0.0
    %1104 = vmatpush1.xpose.msra.mxu0 0.0
    %1105 = vmatprep.subr.mxu0 0.0
    %1106 = vmatpush1.xpose.msra.mxu0 0.0
    %1107 = vmatprep.subr.mxu0 0.0
    %1108 = vmatpush1.xpose.msra.mxu0 0.0
    %1109 = vmatprep.subr.mxu0 0.0
    %1110 = vmatpush1.xpose.msra.mxu0 0.0
    %1111 = vmatprep.subr.mxu0 0.0
    %1112 = vmatpush1.xpose.msra.mxu0 0.0
    %1113 = vmatprep.subr.mxu0 0.0
    %1114 = vmatpush1.xpose.msra.mxu0 0.0
    %1115 = vmatprep.subr.mxu0 0.0
    %1116 = vmatpush1.xpose.msra.mxu0 0.0
    %1117 = vmatprep.subr.mxu0 0.0
    %1118 = vmatpush1.xpose.msra.mxu0 0.0
    %1119 = vmatprep.subr.mxu0 0.0
    %1120 = vmatpush1.xpose.msra.mxu0 0.0
    %1121 = vmatprep.subr.mxu0 0.0
    %1122 = vmatpush1.xpose.msra.mxu0 0.0
    %1123 = vmatprep.subr.mxu0 0.0
    %1124 = vmatpush1.xpose.msra.mxu0 0.0
    %1125 = vmatprep.subr.mxu0 0.0
    %1126 = vmatpush1.xpose.msra.mxu0 0.0
    %1127 = vmatprep.subr.mxu0 0.0
    %1128 = vmatpush1.xpose.msra.mxu0 0.0
    %1129 = vmatprep.subr.mxu0 0.0
    %1130 = vmatpush1.xpose.msra.mxu0 0.0
    %1131 = vmatprep.subr.mxu0 0.0
    %1132 = vmatpush1.xpose.msra.mxu0 0.0
    %1133 = vmatprep.subr.mxu0 0.0
    %1134 = vmatpush1.xpose.msra.mxu0 0.0
    %1135 = vmatprep.subr.mxu0 0.0
    %1136 = vmatpush1.xpose.msra.mxu0 0.0
    %1137 = vmatprep.subr.mxu0 0.0
    %1138 = vmatpush1.xpose.msra.mxu0 0.0
    %1139 = vmatprep.subr.mxu0 0.0
    %1140 = vmatpush1.xpose.msra.mxu0 0.0
    %1141 = vmatprep.mubr.f32.mxu0 0.0
    %1142 = vmatmul.mubr.f32.gmra.mrb[0].mxu0 %v1072
    %v1143 = vpop.f32.mrb[0].mxu0
    %v1144 = vadd.f32 %v395, %v1143
    %v1145 = vpop.f32.mrb[0].mxu0
    %1146 = vdwg.mxu0
    %v1147 = vsel %vm473, %v1144, -inf
    %1148 = vmax.xlane.f32.xlu0 %v1147
    %v1149 = vpop.xlane.xlu0 %1148
    %v1150 = vsub.f32 %v1144, %v1149
    %v1151 = vmul.f32 %v1150, 1.442695
    %v1152 = vpow.pop %v1151
    %v1153 = vsel %vm473, %v1152, 0.0
    %1154 = vadd.xlane.f32.xlu0 %v1153
    %v1155 = vpop.xlane.xlu0 %1154
    %v1156 = vrcp.pop %v1155
    %v1157 = vmul.f32 %v1152, %v1156
    %v1159 = vsel %vm473, %v1157, 0
    %1161 = vmatprep.subr.mxu0 0.0
    %1162 = vmatpush1.msra.mxu0 %v352
    %1163 = vmatprep.subr.mxu0 0.0
    %1164 = vmatpush1.msra.mxu0 0.0
    %1165 = vmatprep.subr.mxu0 0.0
    %1166 = vmatpush1.msra.mxu0 0.0
    %1167 = vmatprep.subr.mxu0 0.0
    %1168 = vmatpush1.msra.mxu0 0.0
    %1169 = vmatprep.subr.mxu0 0.0
    %1170 = vmatpush1.msra.mxu0 0.0
    %1171 = vmatprep.subr.mxu0 0.0
    %1172 = vmatpush1.msra.mxu0 0.0
    %1173 = vmatprep.subr.mxu0 0.0
    %1174 = vmatpush1.msra.mxu0 0.0
    %1175 = vmatprep.subr.mxu0 0.0
    %1176 = vmatpush1.msra.mxu0 0.0
    %1177 = vmatprep.subr.mxu0 0.0
    %1178 = vmatpush1.msra.mxu0 0.0
    %1179 = vmatprep.subr.mxu0 0.0
    %1180 = vmatpush1.msra.mxu0 0.0
    %1181 = vmatprep.subr.mxu0 0.0
    %1182 = vmatpush1.msra.mxu0 0.0
    %1183 = vmatprep.subr.mxu0 0.0
    %1184 = vmatpush1.msra.mxu0 0.0
    %1185 = vmatprep.subr.mxu0 0.0
    %1186 = vmatpush1.msra.mxu0 0.0
    %1187 = vmatprep.subr.mxu0 0.0
    %1188 = vmatpush1.msra.mxu0 0.0
    %1189 = vmatprep.subr.mxu0 0.0
    %1190 = vmatpush1.msra.mxu0 0.0
    %1191 = vmatprep.subr.mxu0 0.0
    %1192 = vmatpush1.msra.mxu0 0.0
    %1193 = vmatprep.subr.mxu0 0.0
    %1194 = vmatpush1.msra.mxu0 0.0
    %1195 = vmatprep.subr.mxu0 0.0
    %1196 = vmatpush1.msra.mxu0 0.0
    %1197 = vmatprep.subr.mxu0 0.0
    %1198 = vmatpush1.msra.mxu0 0.0
    %1199 = vmatprep.subr.mxu0 0.0
    %1200 = vmatpush1.msra.mxu0 0.0
    %1201 = vmatprep.subr.mxu0 0.0
    %1202 = vmatpush1.msra.mxu0 0.0
    %1203 = vmatprep.subr.mxu0 0.0
    %1204 = vmatpush1.msra.mxu0 0.0
    %1205 = vmatprep.subr.mxu0 0.0
    %1206 = vmatpush1.msra.mxu0 0.0
    %1207 = vmatprep.subr.mxu0 0.0
    %1208 = vmatpush1.msra.mxu0 0.0
    %1209 = vmatprep.subr.mxu0 0.0
    %1210 = vmatpush1.msra.mxu0 0.0
    %1211 = vmatprep.subr.mxu0 0.0
    %1212 = vmatpush1.msra.mxu0 0.0
    %1213 = vmatprep.subr.mxu0 0.0
    %1214 = vmatpush1.msra.mxu0 0.0
    %1215 = vmatprep.subr.mxu0 0.0
    %1216 = vmatpush1.msra.mxu0 0.0
    %1217 = vmatprep.subr.mxu0 0.0
    %1218 = vmatpush1.msra.mxu0 0.0
    %1219 = vmatprep.subr.mxu0 0.0
    %1220 = vmatpush1.msra.mxu0 0.0
    %1221 = vmatprep.subr.mxu0 0.0
    %1222 = vmatpush1.msra.mxu0 0.0
    %1223 = vmatprep.subr.mxu0 0.0
    %1224 = vmatpush1.msra.mxu0 0.0
    %1225 = vmatprep.mubr.f32.mxu0 0.0
    %1226 = vmatmul.mubr.f32.gmra.mrb[0].mxu0 %v1159
    %v1227 = vpop.f32.mrb[0].mxu0
    %v1228 = vadd.f32 0.0, %v1227
    %v1229 = vpop.f32.mrb[0].mxu0
    %1230 = vdwg.mxu0
    %1231 = vrot.lane.b32.xlu0 %v380, 112
    %v1232 = vpop.permute.xlu0 %1231
    %1233 = vrot.lane.b32.xlu0 %v394, 112
    %v1234 = vpop.permute.xlu0 %1233
    %v1235 = vsel %vm396, %v1232, 0
    %v1237 = vsel %vm396, %v1234, 0
    %1239 = vmatprep.subr.mxu0 0.0
    %1240 = vmatpush1.xpose.msra.mxu0 %v1237
    %1241 = vmatprep.subr.mxu0 0.0
    %1242 = vmatpush1.xpose.msra.mxu0 0.0
    %1243 = vmatprep.subr.mxu0 0.0
    %1244 = vmatpush1.xpose.msra.mxu0 0.0
    %1245 = vmatprep.subr.mxu0 0.0
    %1246 = vmatpush1.xpose.msra.mxu0 0.0
    %1247 = vmatprep.subr.mxu0 0.0
    %1248 = vmatpush1.xpose.msra.mxu0 0.0
    %1249 = vmatprep.subr.mxu0 0.0
    %1250 = vmatpush1.xpose.msra.mxu0 0.0
    %1251 = vmatprep.subr.mxu0 0.0
    %1252 = vmatpush1.xpose.msra.mxu0 0.0
    %1253 = vmatprep.subr.mxu0 0.0
    %1254 = vmatpush1.xpose.msra.mxu0 0.0
    %1255 = vmatprep.subr.mxu0 0.0
    %1256 = vmatpush1.xpose.msra.mxu0 0.0
    %1257 = vmatprep.subr.mxu0 0.0
    %1258 = vmatpush1.xpose.msra.mxu0 0.0
    %1259 = vmatprep.subr.mxu0 0.0
    %1260 = vmatpush1.xpose.msra.mxu0 0.0
    %1261 = vmatprep.subr.mxu0 0.0
    %1262 = vmatpush1.xpose.msra.mxu0 0.0
    %1263 = vmatprep.subr.mxu0 0.0
    %1264 = vmatpush1.xpose.msra.mxu0 0.0
    %1265 = vmatprep.subr.mxu0 0.0
    %1266 = vmatpush1.xpose.msra.mxu0 0.0
    %1267 = vmatprep.subr.mxu0 0.0
    %1268 = vmatpush1.xpose.msra.mxu0 0.0
    %1269 = vmatprep.subr.mxu0 0.0
    %1270 = vmatpush1.xpose.msra.mxu0 0.0
    %1271 = vmatprep.subr.mxu0 0.0
    %1272 = vmatpush1.xpose.msra.mxu0 0.0
    %1273 = vmatprep.subr.mxu0 0.0
    %1274 = vmatpush1.xpose.msra.mxu0 0.0
    %1275 = vmatprep.subr.mxu0 0.0
    %1276 = vmatpush1.xpose.msra.mxu0 0.0
    %1277 = vmatprep.subr.mxu0 0.0
    %1278 = vmatpush1.xpose.msra.mxu0 0.0
    %1279 = vmatprep.subr.mxu0 0.0
    %1280 = vmatpush1.xpose.msra.mxu0 0.0
    %1281 = vmatprep.subr.mxu0 0.0
    %1282 = vmatpush1.xpose.msra.mxu0 0.0
    %1283 = vmatprep.subr.mxu0 0.0
    %1284 = vmatpush1.xpose.msra.mxu0 0.0
    %1285 = vmatprep.subr.mxu0 0.0
    %1286 = vmatpush1.xpose.msra.mxu0 0.0
    %1287 = vmatprep.subr.mxu0 0.0
    %1288 = vmatpush1.xpose.msra.mxu0 0.0
    %1289 = vmatprep.subr.mxu0 0.0
    %1290 = vmatpush1.xpose.msra.mxu0 0.0
    %1291 = vmatprep.subr.mxu0 0.0
    %1292 = vmatpush1.xpose.msra.mxu0 0.0
    %1293 = vmatprep.subr.mxu0 0.0
    %1294 = vmatpush1.xpose.msra.mxu0 0.0
    %1295 = vmatprep.subr.mxu0 0.0
    %1296 = vmatpush1.xpose.msra.mxu0 0.0
    %1297 = vmatprep.subr.mxu0 0.0
    %1298 = vmatpush1.xpose.msra.mxu0 0.0
    %1299 = vmatprep.subr.mxu0 0.0
    %1300 = vmatpush1.xpose.msra.mxu0 0.0
    %1301 = vmatprep.subr.mxu0 0.0
    %1302 = vmatpush1.xpose.msra.mxu0 0.0
    %1303 = vmatprep.mubr.f32.mxu0 0.0
    %1304 = vmatmul.mubr.f32.gmra.mrb[0].mxu0 %v1235
    %v1305 = vpop.f32.mrb[0].mxu0
    %v1306 = vadd.f32 %v395, %v1305
    %v1307 = vpop.f32.mrb[0].mxu0
    %1308 = vdwg.mxu0
    %v1309 = vsel %vm473, %v1306, -inf
    %1310 = vmax.xlane.f32.xlu0 %v1309
    %v1311 = vpop.xlane.xlu0 %1310
    %v1312 = vsub.f32 %v1306, %v1311
    %v1313 = vmul.f32 %v1312, 1.442695
    %v1314 = vpow.pop %v1313
    %v1315 = vsel %vm473, %v1314, 0.0
    %1316 = vadd.xlane.f32.xlu0 %v1315
    %v1317 = vpop.xlane.xlu0 %1316
    %v1318 = vrcp.pop %v1317
    %v1319 = vmul.f32 %v1314, %v1318
    %1321 = vrot.lane.b32.xlu0 %v352, 112
    %v1322 = vpop.permute.xlu0 %1321
    %v1325 = vsel %vm473, %v1319, 0
    %1327 = vmatprep.subr.mxu0 0.0
    %1328 = vmatpush1.msra.mxu0 %v1322
    %1329 = vmatprep.subr.mxu0 0.0
    %1330 = vmatpush1.msra.mxu0 0.0
    %1331 = vmatprep.subr.mxu0 0.0
    %1332 = vmatpush1.msra.mxu0 0.0
    %1333 = vmatprep.subr.mxu0 0.0
    %1334 = vmatpush1.msra.mxu0 0.0
    %1335 = vmatprep.subr.mxu0 0.0
    %1336 = vmatpush1.msra.mxu0 0.0
    %1337 = vmatprep.subr.mxu0 0.0
    %1338 = vmatpush1.msra.mxu0 0.0
    %1339 = vmatprep.subr.mxu0 0.0
    %1340 = vmatpush1.msra.mxu0 0.0
    %1341 = vmatprep.subr.mxu0 0.0
    %1342 = vmatpush1.msra.mxu0 0.0
    %1343 = vmatprep.subr.mxu0 0.0
    %1344 = vmatpush1.msra.mxu0 0.0
    %1345 = vmatprep.subr.mxu0 0.0
    %1346 = vmatpush1.msra.mxu0 0.0
    %1347 = vmatprep.subr.mxu0 0.0
    %1348 = vmatpush1.msra.mxu0 0.0
    %1349 = vmatprep.subr.mxu0 0.0
    %1350 = vmatpush1.msra.mxu0 0.0
    %1351 = vmatprep.subr.mxu0 0.0
    %1352 = vmatpush1.msra.mxu0 0.0
    %1353 = vmatprep.subr.mxu0 0.0
    %1354 = vmatpush1.msra.mxu0 0.0
    %1355 = vmatprep.subr.mxu0 0.0
    %1356 = vmatpush1.msra.mxu0 0.0
    %1357 = vmatprep.subr.mxu0 0.0
    %1358 = vmatpush1.msra.mxu0 0.0
    %1359 = vmatprep.subr.mxu0 0.0
    %1360 = vmatpush1.msra.mxu0 0.0
    %1361 = vmatprep.subr.mxu0 0.0
    %1362 = vmatpush1.msra.mxu0 0.0
    %1363 = vmatprep.subr.mxu0 0.0
    %1364 = vmatpush1.msra.mxu0 0.0
    %1365 = vmatprep.subr.mxu0 0.0
    %1366 = vmatpush1.msra.mxu0 0.0
    %1367 = vmatprep.subr.mxu0 0.0
    %1368 = vmatpush1.msra.mxu0 0.0
    %1369 = vmatprep.subr.mxu0 0.0
    %1370 = vmatpush1.msra.mxu0 0.0
    %1371 = vmatprep.subr.mxu0 0.0
    %1372 = vmatpush1.msra.mxu0 0.0
    %1373 = vmatprep.subr.mxu0 0.0
    %1374 = vmatpush1.msra.mxu0 0.0
    %1375 = vmatprep.subr.mxu0 0.0
    %1376 = vmatpush1.msra.mxu0 0.0
    %1377 = vmatprep.subr.mxu0 0.0
    %1378 = vmatpush1.msra.mxu0 0.0
    %1379 = vmatprep.subr.mxu0 0.0
    %1380 = vmatpush1.msra.mxu0 0.0
    %1381 = vmatprep.subr.mxu0 0.0
    %1382 = vmatpush1.msra.mxu0 0.0
    %1383 = vmatprep.subr.mxu0 0.0
    %1384 = vmatpush1.msra.mxu0 0.0
    %1385 = vmatprep.subr.mxu0 0.0
    %1386 = vmatpush1.msra.mxu0 0.0
    %1387 = vmatprep.subr.mxu0 0.0
    %1388 = vmatpush1.msra.mxu0 0.0
    %1389 = vmatprep.subr.mxu0 0.0
    %1390 = vmatpush1.msra.mxu0 0.0
    %1391 = vmatprep.mubr.f32.mxu0 0.0
    %1392 = vmatmul.mubr.f32.gmra.mrb[0].mxu0 %v1325
    %v1393 = vpop.f32.mrb[0].mxu0
    %v1394 = vadd.f32 0.0, %v1393
    %v1395 = vpop.f32.mrb[0].mxu0
    %1396 = vdwg.mxu0
    %1397 = vrot.lane.b32.xlu0 %v380, 96
    %v1398 = vpop.permute.xlu0 %1397
    %1399 = vrot.lane.b32.xlu0 %v394, 96
    %v1400 = vpop.permute.xlu0 %1399
    %v1401 = vsel %vm396, %v1398, 0
    %v1403 = vsel %vm396, %v1400, 0
    %1405 = vmatprep.subr.mxu0 0.0
    %1406 = vmatpush1.xpose.msra.mxu0 %v1403
    %1407 = vmatprep.subr.mxu0 0.0
    %1408 = vmatpush1.xpose.msra.mxu0 0.0
    %1409 = vmatprep.subr.mxu0 0.0
    %1410 = vmatpush1.xpose.msra.mxu0 0.0
    %1411 = vmatprep.subr.mxu0 0.0
    %1412 = vmatpush1.xpose.msra.mxu0 0.0
    %1413 = vmatprep.subr.mxu0 0.0
    %1414 = vmatpush1.xpose.msra.mxu0 0.0
    %1415 = vmatprep.subr.mxu0 0.0
    %1416 = vmatpush1.xpose.msra.mxu0 0.0
    %1417 = vmatprep.subr.mxu0 0.0
    %1418 = vmatpush1.xpose.msra.mxu0 0.0
    %1419 = vmatprep.subr.mxu0 0.0
    %1420 = vmatpush1.xpose.msra.mxu0 0.0
    %1421 = vmatprep.subr.mxu0 0.0
    %1422 = vmatpush1.xpose.msra.mxu0 0.0
    %1423 = vmatprep.subr.mxu0 0.0
    %1424 = vmatpush1.xpose.msra.mxu0 0.0
    %1425 = vmatprep.subr.mxu0 0.0
    %1426 = vmatpush1.xpose.msra.mxu0 0.0
    %1427 = vmatprep.subr.mxu0 0.0
    %1428 = vmatpush1.xpose.msra.mxu0 0.0
    %1429 = vmatprep.subr.mxu0 0.0
    %1430 = vmatpush1.xpose.msra.mxu0 0.0
    %1431 = vmatprep.subr.mxu0 0.0
    %1432 = vmatpush1.xpose.msra.mxu0 0.0
    %1433 = vmatprep.subr.mxu0 0.0
    %1434 = vmatpush1.xpose.msra.mxu0 0.0
    %1435 = vmatprep.subr.mxu0 0.0
    %1436 = vmatpush1.xpose.msra.mxu0 0.0
    %1437 = vmatprep.subr.mxu0 0.0
    %1438 = vmatpush1.xpose.msra.mxu0 0.0
    %1439 = vmatprep.subr.mxu0 0.0
    %1440 = vmatpush1.xpose.msra.mxu0 0.0
    %1441 = vmatprep.subr.mxu0 0.0
    %1442 = vmatpush1.xpose.msra.mxu0 0.0
    %1443 = vmatprep.subr.mxu0 0.0
    %1444 = vmatpush1.xpose.msra.mxu0 0.0
    %1445 = vmatprep.subr.mxu0 0.0
    %1446 = vmatpush1.xpose.msra.mxu0 0.0
    %1447 = vmatprep.subr.mxu0 0.0
    %1448 = vmatpush1.xpose.msra.mxu0 0.0
    %1449 = vmatprep.subr.mxu0 0.0
    %1450 = vmatpush1.xpose.msra.mxu0 0.0
    %1451 = vmatprep.subr.mxu0 0.0
    %1452 = vmatpush1.xpose.msra.mxu0 0.0
    %1453 = vmatprep.subr.mxu0 0.0
    %1454 = vmatpush1.xpose.msra.mxu0 0.0
    %1455 = vmatprep.subr.mxu0 0.0
    %1456 = vmatpush1.xpose.msra.mxu0 0.0
    %1457 = vmatprep.subr.mxu0 0.0
    %1458 = vmatpush1.xpose.msra.mxu0 0.0
    %1459 = vmatprep.subr.mxu0 0.0
    %1460 = vmatpush1.xpose.msra.mxu0 0.0
    %1461 = vmatprep.subr.mxu0 0.0
    %1462 = vmatpush1.xpose.msra.mxu0 0.0
    %1463 = vmatprep.subr.mxu0 0.0
    %1464 = vmatpush1.xpose.msra.mxu0 0.0
    %1465 = vmatprep.subr.mxu0 0.0
    %1466 = vmatpush1.xpose.msra.mxu0 0.0
    %1467 = vmatprep.subr.mxu0 0.0
    %1468 = vmatpush1.xpose.msra.mxu0 0.0
    %1469 = vmatprep.mubr.f32.mxu0 0.0
    %1470 = vmatmul.mubr.f32.gmra.mrb[0].mxu0 %v1401
    %v1471 = vpop.f32.mrb[0].mxu0
    %v1472 = vadd.f32 %v395, %v1471
    %v1473 = vpop.f32.mrb[0].mxu0
    %1474 = vdwg.mxu0
    %v1475 = vsel %vm473, %v1472, -inf
    %1476 = vmax.xlane.f32.xlu0 %v1475
    %v1477 = vpop.xlane.xlu0 %1476
    %v1478 = vsub.f32 %v1472, %v1477
    %v1479 = vmul.f32 %v1478, 1.442695
    %v1480 = vpow.pop %v1479
    %v1481 = vsel %vm473, %v1480, 0.0
    %1482 = vadd.xlane.f32.xlu0 %v1481
    %v1483 = vpop.xlane.xlu0 %1482
    %v1484 = vrcp.pop %v1483
    %v1485 = vmul.f32 %v1480, %v1484
    %1486 = vrot.lane.b32.xlu0 %v352, 96
    %v1487 = vpop.permute.xlu0 %1486
    %v1490 = vsel %vm473, %v1485, 0
    %1492 = vmatprep.subr.mxu0 0.0
    %1493 = vmatpush1.msra.mxu0 %v1487
    %1494 = vmatprep.subr.mxu0 0.0
    %1495 = vmatpush1.msra.mxu0 0.0
    %1496 = vmatprep.subr.mxu0 0.0
    %1497 = vmatpush1.msra.mxu0 0.0
    %1498 = vmatprep.subr.mxu0 0.0
    %1499 = vmatpush1.msra.mxu0 0.0
    %1500 = vmatprep.subr.mxu0 0.0
    %1501 = vmatpush1.msra.mxu0 0.0
    %1502 = vmatprep.subr.mxu0 0.0
    %1503 = vmatpush1.msra.mxu0 0.0
    %1504 = vmatprep.subr.mxu0 0.0
    %1505 = vmatpush1.msra.mxu0 0.0
    %1506 = vmatprep.subr.mxu0 0.0
    %1507 = vmatpush1.msra.mxu0 0.0
    %1508 = vmatprep.subr.mxu0 0.0
    %1509 = vmatpush1.msra.mxu0 0.0
    %1510 = vmatprep.subr.mxu0 0.0
    %1511 = vmatpush1.msra.mxu0 0.0
    %1512 = vmatprep.subr.mxu0 0.0
    %1513 = vmatpush1.msra.mxu0 0.0
    %1514 = vmatprep.subr.mxu0 0.0
    %1515 = vmatpush1.msra.mxu0 0.0
    %1516 = vmatprep.subr.mxu0 0.0
    %1517 = vmatpush1.msra.mxu0 0.0
    %1518 = vmatprep.subr.mxu0 0.0
    %1519 = vmatpush1.msra.mxu0 0.0
    %1520 = vmatprep.subr.mxu0 0.0
    %1521 = vmatpush1.msra.mxu0 0.0
    %1522 = vmatprep.subr.mxu0 0.0
    %1523 = vmatpush1.msra.mxu0 0.0
    %1524 = vmatprep.subr.mxu0 0.0
    %1525 = vmatpush1.msra.mxu0 0.0
    %1526 = vmatprep.subr.mxu0 0.0
    %1527 = vmatpush1.msra.mxu0 0.0
    %1528 = vmatprep.subr.mxu0 0.0
    %1529 = vmatpush1.msra.mxu0 0.0
    %1530 = vmatprep.subr.mxu0 0.0
    %1531 = vmatpush1.msra.mxu0 0.0
    %1532 = vmatprep.subr.mxu0 0.0
    %1533 = vmatpush1.msra.mxu0 0.0
    %1534 = vmatprep.subr.mxu0 0.0
    %1535 = vmatpush1.msra.mxu0 0.0
    %1536 = vmatprep.subr.mxu0 0.0
    %1537 = vmatpush1.msra.mxu0 0.0
    %1538 = vmatprep.subr.mxu0 0.0
    %1539 = vmatpush1.msra.mxu0 0.0
    %1540 = vmatprep.subr.mxu0 0.0
    %1541 = vmatpush1.msra.mxu0 0.0
    %1542 = vmatprep.subr.mxu0 0.0
    %1543 = vmatpush1.msra.mxu0 0.0
    %1544 = vmatprep.subr.mxu0 0.0
    %1545 = vmatpush1.msra.mxu0 0.0
    %1546 = vmatprep.subr.mxu0 0.0
    %1547 = vmatpush1.msra.mxu0 0.0
    %1548 = vmatprep.subr.mxu0 0.0
    %1549 = vmatpush1.msra.mxu0 0.0
    %1550 = vmatprep.subr.mxu0 0.0
    %1551 = vmatpush1.msra.mxu0 0.0
    %1552 = vmatprep.subr.mxu0 0.0
    %1553 = vmatpush1.msra.mxu0 0.0
    %1554 = vmatprep.subr.mxu0 0.0
    %1555 = vmatpush1.msra.mxu0 0.0
    %1556 = vmatprep.mubr.f32.mxu0 0.0
    %1557 = vmatmul.mubr.f32.gmra.mrb[0].mxu0 %v1490
    %v1558 = vpop.f32.mrb[0].mxu0
    %v1559 = vadd.f32 0.0, %v1558
    %v1560 = vpop.f32.mrb[0].mxu0
    %1561 = vdwg.mxu0
    %1562 = vrot.lane.b32.xlu0 %v380, 80
    %v1563 = vpop.permute.xlu0 %1562
    %1564 = vrot.lane.b32.xlu0 %v394, 80
    %v1565 = vpop.permute.xlu0 %1564
    %v1566 = vsel %vm396, %v1563, 0
    %v1568 = vsel %vm396, %v1565, 0
    %1570 = vmatprep.subr.mxu0 0.0
    %1571 = vmatpush1.xpose.msra.mxu0 %v1568
    %1572 = vmatprep.subr.mxu0 0.0
    %1573 = vmatpush1.xpose.msra.mxu0 0.0
    %1574 = vmatprep.subr.mxu0 0.0
    %1575 = vmatpush1.xpose.msra.mxu0 0.0
    %1576 = vmatprep.subr.mxu0 0.0
    %1577 = vmatpush1.xpose.msra.mxu0 0.0
    %1578 = vmatprep.subr.mxu0 0.0
    %1579 = vmatpush1.xpose.msra.mxu0 0.0
    %1580 = vmatprep.subr.mxu0 0.0
    %1581 = vmatpush1.xpose.msra.mxu0 0.0
    %1582 = vmatprep.subr.mxu0 0.0
    %1583 = vmatpush1.xpose.msra.mxu0 0.0
    %1584 = vmatprep.subr.mxu0 0.0
    %1585 = vmatpush1.xpose.msra.mxu0 0.0
    %1586 = vmatprep.subr.mxu0 0.0
    %1587 = vmatpush1.xpose.msra.mxu0 0.0
    %1588 = vmatprep.subr.mxu0 0.0
    %1589 = vmatpush1.xpose.msra.mxu0 0.0
    %1590 = vmatprep.subr.mxu0 0.0
    %1591 = vmatpush1.xpose.msra.mxu0 0.0
    %1592 = vmatprep.subr.mxu0 0.0
    %1593 = vmatpush1.xpose.msra.mxu0 0.0
    %1594 = vmatprep.subr.mxu0 0.0
    %1595 = vmatpush1.xpose.msra.mxu0 0.0
    %1596 = vmatprep.subr.mxu0 0.0
    %1597 = vmatpush1.xpose.msra.mxu0 0.0
    %1598 = vmatprep.subr.mxu0 0.0
    %1599 = vmatpush1.xpose.msra.mxu0 0.0
    %1600 = vmatprep.subr.mxu0 0.0
    %1601 = vmatpush1.xpose.msra.mxu0 0.0
    %1602 = vmatprep.subr.mxu0 0.0
    %1603 = vmatpush1.xpose.msra.mxu0 0.0
    %1604 = vmatprep.subr.mxu0 0.0
    %1605 = vmatpush1.xpose.msra.mxu0 0.0
    %1606 = vmatprep.subr.mxu0 0.0
    %1607 = vmatpush1.xpose.msra.mxu0 0.0
    %1608 = vmatprep.subr.mxu0 0.0
    %1609 = vmatpush1.xpose.msra.mxu0 0.0
    %1610 = vmatprep.subr.mxu0 0.0
    %1611 = vmatpush1.xpose.msra.mxu0 0.0
    %1612 = vmatprep.subr.mxu0 0.0
    %1613 = vmatpush1.xpose.msra.mxu0 0.0
    %1614 = vmatprep.subr.mxu0 0.0
    %1615 = vmatpush1.xpose.msra.mxu0 0.0
    %1616 = vmatprep.subr.mxu0 0.0
    %1617 = vmatpush1.xpose.msra.mxu0 0.0
    %1618 = vmatprep.subr.mxu0 0.0
    %1619 = vmatpush1.xpose.msra.mxu0 0.0
    %1620 = vmatprep.subr.mxu0 0.0
    %1621 = vmatpush1.xpose.msra.mxu0 0.0
    %1622 = vmatprep.subr.mxu0 0.0
    %1623 = vmatpush1.xpose.msra.mxu0 0.0
    %1624 = vmatprep.subr.mxu0 0.0
    %1625 = vmatpush1.xpose.msra.mxu0 0.0
    %1626 = vmatprep.subr.mxu0 0.0
    %1627 = vmatpush1.xpose.msra.mxu0 0.0
    %1628 = vmatprep.subr.mxu0 0.0
    %1629 = vmatpush1.xpose.msra.mxu0 0.0
    %1630 = vmatprep.subr.mxu0 0.0
    %1631 = vmatpush1.xpose.msra.mxu0 0.0
    %1632 = vmatprep.subr.mxu0 0.0
    %1633 = vmatpush1.xpose.msra.mxu0 0.0
    %1634 = vmatprep.mubr.f32.mxu0 0.0
    %1635 = vmatmul.mubr.f32.gmra.mrb[0].mxu0 %v1566
    %v1636 = vpop.f32.mrb[0].mxu0
    %v1637 = vadd.f32 %v395, %v1636
    %v1638 = vpop.f32.mrb[0].mxu0
    %1639 = vdwg.mxu0
    %v1640 = vsel %vm473, %v1637, -inf
    %1641 = vmax.xlane.f32.xlu0 %v1640
    %v1642 = vpop.xlane.xlu0 %1641
    %v1643 = vsub.f32 %v1637, %v1642
    %v1644 = vmul.f32 %v1643, 1.442695
    %v1645 = vpow.pop %v1644
    %v1646 = vsel %vm473, %v1645, 0.0
    %1647 = vadd.xlane.f32.xlu0 %v1646
    %v1648 = vpop.xlane.xlu0 %1647
    %v1649 = vrcp.pop %v1648
    %v1650 = vmul.f32 %v1645, %v1649
    %1651 = vrot.lane.b32.xlu0 %v352, 80
    %v1652 = vpop.permute.xlu0 %1651
    %v1655 = vsel %vm473, %v1650, 0
    %1657 = vmatprep.subr.mxu0 0.0
    %1658 = vmatpush1.msra.mxu0 %v1652
    %1659 = vmatprep.subr.mxu0 0.0
    %1660 = vmatpush1.msra.mxu0 0.0
    %1661 = vmatprep.subr.mxu0 0.0
    %1662 = vmatpush1.msra.mxu0 0.0
    %1663 = vmatprep.subr.mxu0 0.0
    %1664 = vmatpush1.msra.mxu0 0.0
    %1665 = vmatprep.subr.mxu0 0.0
    %1666 = vmatpush1.msra.mxu0 0.0
    %1667 = vmatprep.subr.mxu0 0.0
    %1668 = vmatpush1.msra.mxu0 0.0
    %1669 = vmatprep.subr.mxu0 0.0
    %1670 = vmatpush1.msra.mxu0 0.0
    %1671 = vmatprep.subr.mxu0 0.0
    %1672 = vmatpush1.msra.mxu0 0.0
    %1673 = vmatprep.subr.mxu0 0.0
    %1674 = vmatpush1.msra.mxu0 0.0
    %1675 = vmatprep.subr.mxu0 0.0
    %1676 = vmatpush1.msra.mxu0 0.0
    %1677 = vmatprep.subr.mxu0 0.0
    %1678 = vmatpush1.msra.mxu0 0.0
    %1679 = vmatprep.subr.mxu0 0.0
    %1680 = vmatpush1.msra.mxu0 0.0
    %1681 = vmatprep.subr.mxu0 0.0
    %1682 = vmatpush1.msra.mxu0 0.0
    %1683 = vmatprep.subr.mxu0 0.0
    %1684 = vmatpush1.msra.mxu0 0.0
    %1685 = vmatprep.subr.mxu0 0.0
    %1686 = vmatpush1.msra.mxu0 0.0
    %1687 = vmatprep.subr.mxu0 0.0
    %1688 = vmatpush1.msra.mxu0 0.0
    %1689 = vmatprep.subr.mxu0 0.0
    %1690 = vmatpush1.msra.mxu0 0.0
    %1691 = vmatprep.subr.mxu0 0.0
    %1692 = vmatpush1.msra.mxu0 0.0
    %1693 = vmatprep.subr.mxu0 0.0
    %1694 = vmatpush1.msra.mxu0 0.0
    %1695 = vmatprep.subr.mxu0 0.0
    %1696 = vmatpush1.msra.mxu0 0.0
    %1697 = vmatprep.subr.mxu0 0.0
    %1698 = vmatpush1.msra.mxu0 0.0
    %1699 = vmatprep.subr.mxu0 0.0
    %1700 = vmatpush1.msra.mxu0 0.0
    %1701 = vmatprep.subr.mxu0 0.0
    %1702 = vmatpush1.msra.mxu0 0.0
    %1703 = vmatprep.subr.mxu0 0.0
    %1704 = vmatpush1.msra.mxu0 0.0
    %1705 = vmatprep.subr.mxu0 0.0
    %1706 = vmatpush1.msra.mxu0 0.0
    %1707 = vmatprep.subr.mxu0 0.0
    %1708 = vmatpush1.msra.mxu0 0.0
    %1709 = vmatprep.subr.mxu0 0.0
    %1710 = vmatpush1.msra.mxu0 0.0
    %1711 = vmatprep.subr.mxu0 0.0
    %1712 = vmatpush1.msra.mxu0 0.0
    %1713 = vmatprep.subr.mxu0 0.0
    %1714 = vmatpush1.msra.mxu0 0.0
    %1715 = vmatprep.subr.mxu0 0.0
    %1716 = vmatpush1.msra.mxu0 0.0
    %1717 = vmatprep.subr.mxu0 0.0
    %1718 = vmatpush1.msra.mxu0 0.0
    %1719 = vmatprep.subr.mxu0 0.0
    %1720 = vmatpush1.msra.mxu0 0.0
    %1721 = vmatprep.mubr.f32.mxu0 0.0
    %1722 = vmatmul.mubr.f32.gmra.mrb[0].mxu0 %v1655
    %v1723 = vpop.f32.mrb[0].mxu0
    %v1724 = vadd.f32 0.0, %v1723
    %v1725 = vpop.f32.mrb[0].mxu0
    %1726 = vdwg.mxu0
    %1728 = vrot.lane.b32.xlu0 %v1394, 16
    %v1729 = vpop.permute.xlu0 %1728
    %1732 = vrot.lane.b32.xlu0 %v1559, 32
    %v1733 = vpop.permute.xlu0 %1732
    %1736 = vrot.lane.b32.xlu0 %v1724, 48
    %v1737 = vpop.permute.xlu0 %1736
    %v1739 = vsel %vm396, %v1228, %v1729
    %v1740 = vsel %vm1067, %v1739, %v1733
    %v1741 = vsel %vm1069, %v1740, %v1737
    %v1742 = vld [vmem:[%s5] sm:$0xff]
    %v1743 = vld [vmem:[%s5 + $0x8] sm:$0xff]
    %v1744 = vld [vmem:[%s5 + $0x10] sm:$0xff]
    %v1745 = vld [vmem:[%s5 + $0x18] sm:$0xff]
    %v1746 = vld [vmem:[%s5 + $0x20] sm:$0xff]
    %v1747 = vld [vmem:[%s5 + $0x28] sm:$0xff]
    %v1748 = vld [vmem:[%s5 + $0x30] sm:$0xff]
    %v1749 = vld [vmem:[%s5 + $0x38] sm:$0xff]
    %v1751 = vsel %vm110, %v1070, 0
    %v1754 = vsel %vm110, %v1741, 0
    %1756 = vmatprep.subr.mxu0 0.0
    %1757 = vmatpush1.msra.mxu0 %v1742
    %1758 = vmatprep.subr.mxu0 0.0
    %1759 = vmatpush1.msra.mxu0 %v1743
    %1760 = vmatprep.subr.mxu0 0.0
    %1761 = vmatpush1.msra.mxu0 %v1744
    %1762 = vmatprep.subr.mxu0 0.0
    %1763 = vmatpush1.msra.mxu0 %v1745
    %1764 = vmatprep.subr.mxu0 0.0
    %1765 = vmatpush1.msra.mxu0 %v1746
    %1766 = vmatprep.subr.mxu0 0.0
    %1767 = vmatpush1.msra.mxu0 %v1747
    %1768 = vmatprep.subr.mxu0 0.0
    %1769 = vmatpush1.msra.mxu0 %v1748
    %1770 = vmatprep.subr.mxu0 0.0
    %1771 = vmatpush1.msra.mxu0 %v1749
    %1772 = vmatprep.subr.mxu0 0.0
    %1773 = vmatpush1.msra.mxu0 0.0
    %1774 = vmatprep.subr.mxu0 0.0
    %1775 = vmatpush1.msra.mxu0 0.0
    %1776 = vmatprep.subr.mxu0 0.0
    %1777 = vmatpush1.msra.mxu0 0.0
    %1778 = vmatprep.subr.mxu0 0.0
    %1779 = vmatpush1.msra.mxu0 0.0
    %1780 = vmatprep.subr.mxu0 0.0
    %1781 = vmatpush1.msra.mxu0 0.0
    %1782 = vmatprep.subr.mxu0 0.0
    %1783 = vmatpush1.msra.mxu0 0.0
    %1784 = vmatprep.subr.mxu0 0.0
    %1785 = vmatpush1.msra.mxu0 0.0
    %1786 = vmatprep.subr.mxu0 0.0
    %1787 = vmatpush1.msra.mxu0 0.0
    %1788 = vmatprep.subr.mxu0 0.0
    %1789 = vmatpush1.msra.mxu0 0.0
    %1790 = vmatprep.subr.mxu0 0.0
    %1791 = vmatpush1.msra.mxu0 0.0
    %1792 = vmatprep.subr.mxu0 0.0
    %1793 = vmatpush1.msra.mxu0 0.0
    %1794 = vmatprep.subr.mxu0 0.0
    %1795 = vmatpush1.msra.mxu0 0.0
    %1796 = vmatprep.subr.mxu0 0.0
    %1797 = vmatpush1.msra.mxu0 0.0
    %1798 = vmatprep.subr.mxu0 0.0
    %1799 = vmatpush1.msra.mxu0 0.0
    %1800 = vmatprep.subr.mxu0 0.0
    %1801 = vmatpush1.msra.mxu0 0.0
    %1802 = vmatprep.subr.mxu0 0.0
    %1803 = vmatpush1.msra.mxu0 0.0
    %1804 = vmatprep.subr.mxu0 0.0
    %1805 = vmatpush1.msra.mxu0 0.0
    %1806 = vmatprep.subr.mxu0 0.0
    %1807 = vmatpush1.msra.mxu0 0.0
    %1808 = vmatprep.subr.mxu0 0.0
    %1809 = vmatpush1.msra.mxu0 0.0
    %1810 = vmatprep.subr.mxu0 0.0
    %1811 = vmatpush1.msra.mxu0 0.0
    %1812 = vmatprep.subr.mxu0 0.0
    %1813 = vmatpush1.msra.mxu0 0.0
    %1814 = vmatprep.subr.mxu0 0.0
    %1815 = vmatpush1.msra.mxu0 0.0
    %1816 = vmatprep.subr.mxu0 0.0
    %1817 = vmatpush1.msra.mxu0 0.0
    %1818 = vmatprep.subr.mxu0 0.0
    %1819 = vmatpush1.msra.mxu0 0.0
    %1820 = vmatprep.mubr.f32.mxu0 0.0
    %1821 = vmatmul.mubr.f32.gmra.mrb[0].mxu0 %v1751
    %v1822 = vpop.f32.mrb[0].mxu0
    %v1823 = vadd.f32 0.0, %v1822
    %v1824 = vpop.f32.mrb[0].mxu0
    %1825 = vmatprep.mubr.f32.mxu0 0.0
    %1826 = vmatmul.mubr.f32.gmra.mrb[0].mxu0 %v1754
    %v1827 = vpop.f32.mrb[0].mxu0
    %v1828 = vadd.f32 0.0, %v1827
    %v1829 = vpop.f32.mrb[0].mxu0
    %1830 = vdwg.mxu0
    %v1831 = vadd.f32 %v108, %v1823
    %v1832 = vadd.f32 %v109, %v1828
    %v1833 = vld [vmem:[#allocation8] sm:$0x1]
    %v1835 = vlaneseq
    %v1836 = vshrl.u32 %v1835, 7
    %v1837 = vsub.s32 0, %v1836
    %v1838 = vrot.slane %v1833, %v1837
    %v1840 = vadd.f32 %v1831, %v1838
    %v1841 = vadd.f32 %v1832, %v1838
    %v1842 = vld [vmem:[%s7] sm:$0xff]
    %v1843 = vld [vmem:[%s7 + $0x8] sm:$0xff]
    %v1844 = vld [vmem:[%s7 + $0x10] sm:$0xff]
    %v1845 = vld [vmem:[%s7 + $0x18] sm:$0xff]
    %v1846 = vld [vmem:[%s7 + $0x20] sm:$0xff]
    %v1847 = vld [vmem:[%s7 + $0x28] sm:$0xff]
    %v1848 = vld [vmem:[%s7 + $0x30] sm:$0xff]
    %v1849 = vld [vmem:[%s7 + $0x38] sm:$0xff]
    %v1850 = vld [vmem:[%s7 + $0x40] sm:$0xff]
    %v1851 = vld [vmem:[%s7 + $0x48] sm:$0xff]
    %v1852 = vld [vmem:[%s7 + $0x50] sm:$0xff]
    %v1853 = vld [vmem:[%s7 + $0x58] sm:$0xff]
    %v1854 = vld [vmem:[%s7 + $0x60] sm:$0xff]
    %v1855 = vld [vmem:[%s7 + $0x68] sm:$0xff]
    %v1856 = vld [vmem:[%s7 + $0x70] sm:$0xff]
    %v1857 = vld [vmem:[%s7 + $0x78] sm:$0xff]
    %v1858 = vld [vmem:[%s8] sm:$0x3]
    %v1860 = vlaneseq
    %v1861 = vshrl.u32 %v1860, 7
    %v1862 = vsub.s32 0, %v1861
    %v1863 = vrot.slane %v1858, %v1862
    %v1864 = vlaneseq
    %v1865 = vshrl.u32 %v1864, 7
    %v1866 = vsub.s32 1, %v1865
    %v1867 = vrot.slane %v1858, %v1866
    %1870 = vmatprep.subr.mxu0 %v1843
    %1871 = vmatpush1.msra.mxu0 %v1842
    %1872 = vmatprep.subr.mxu0 %v1845
    %1873 = vmatpush1.msra.mxu0 %v1844
    %1874 = vmatprep.subr.mxu0 %v1847
    %1875 = vmatpush1.msra.mxu0 %v1846
    %1876 = vmatprep.subr.mxu0 %v1849
    %1877 = vmatpush1.msra.mxu0 %v1848
    %1878 = vmatprep.subr.mxu0 %v1851
    %1879 = vmatpush1.msra.mxu0 %v1850
    %1880 = vmatprep.subr.mxu0 %v1853
    %1881 = vmatpush1.msra.mxu0 %v1852
    %1882 = vmatprep.subr.mxu0 %v1855
    %1883 = vmatpush1.msra.mxu0 %v1854
    %1884 = vmatprep.subr.mxu0 %v1857
    %1885 = vmatpush1.msra.mxu0 %v1856
    %1886 = vmatprep.subr.mxu0 0.0
    %1887 = vmatpush1.msra.mxu0 0.0
    %1888 = vmatprep.subr.mxu0 0.0
    %1889 = vmatpush1.msra.mxu0 0.0
    %1890 = vmatprep.subr.mxu0 0.0
    %1891 = vmatpush1.msra.mxu0 0.0
    %1892 = vmatprep.subr.mxu0 0.0
    %1893 = vmatpush1.msra.mxu0 0.0
    %1894 = vmatprep.subr.mxu0 0.0
    %1895 = vmatpush1.msra.mxu0 0.0
    %1896 = vmatprep.subr.mxu0 0.0
    %1897 = vmatpush1.msra.mxu0 0.0
    %1898 = vmatprep.subr.mxu0 0.0
    %1899 = vmatpush1.msra.mxu0 0.0
    %1900 = vmatprep.subr.mxu0 0.0
    %1901 = vmatpush1.msra.mxu0 0.0
    %1902 = vmatprep.subr.mxu0 0.0
    %1903 = vmatpush1.msra.mxu0 0.0
    %1904 = vmatprep.subr.mxu0 0.0
    %1905 = vmatpush1.msra.mxu0 0.0
    %1906 = vmatprep.subr.mxu0 0.0
    %1907 = vmatpush1.msra.mxu0 0.0
    %1908 = vmatprep.subr.mxu0 0.0
    %1909 = vmatpush1.msra.mxu0 0.0
    %1910 = vmatprep.subr.mxu0 0.0
    %1911 = vmatpush1.msra.mxu0 0.0
    %1912 = vmatprep.subr.mxu0 0.0
    %1913 = vmatpush1.msra.mxu0 0.0
    %1914 = vmatprep.subr.mxu0 0.0
    %1915 = vmatpush1.msra.mxu0 0.0
    %1916 = vmatprep.subr.mxu0 0.0
    %1917 = vmatpush1.msra.mxu0 0.0
    %1918 = vmatprep.subr.mxu0 0.0
    %1919 = vmatpush1.msra.mxu0 0.0
    %1920 = vmatprep.subr.mxu0 0.0
    %1921 = vmatpush1.msra.mxu0 0.0
    %1922 = vmatprep.subr.mxu0 0.0
    %1923 = vmatpush1.msra.mxu0 0.0
    %1924 = vmatprep.subr.mxu0 0.0
    %1925 = vmatpush1.msra.mxu0 0.0
    %1926 = vmatprep.subr.mxu0 0.0
    %1927 = vmatpush1.msra.mxu0 0.0
    %1928 = vmatprep.subr.mxu0 0.0
    %1929 = vmatpush1.msra.mxu0 0.0
    %1930 = vmatprep.subr.mxu0 0.0
    %1931 = vmatpush1.msra.mxu0 0.0
    %1932 = vmatprep.subr.mxu0 0.0
    %1933 = vmatpush1.msra.mxu0 0.0
    %1934 = vmatprep.mubr.f32.mxu0 0.0
    %1935 = vmatmul.mubr.f32.gmra.mrb[0].mxu0 %v198
    %v1936 = vpop.f32.mrb[0].mxu0
    %v1937 = vadd.f32 %v1863, %v1936
    %v1938 = vpop.f32.mrb[0].mxu0
    %v1939 = vadd.f32 %v1867, %v1938
    %1940 = vmatprep.mubr.f32.mxu0 0.0
    %1941 = vmatmul.mubr.f32.gmra.mrb[0].mxu0 %v201
    %v1942 = vpop.f32.mrb[0].mxu0
    %v1943 = vadd.f32 %v1863, %v1942
    %v1944 = vpop.f32.mrb[0].mxu0
    %v1945 = vadd.f32 %v1867, %v1944
    %1946 = vdwg.mxu0
    %v1947 = vmul.f32 %v1937, 0.5
    %v1948 = vmul.f32 %v1939, 0.5
    %v1949 = vmul.f32 %v1943, 0.5
    %v1950 = vmul.f32 %v1945, 0.5
    %v1951 = vmul.f32 %v1937, 0.044715
    %v1952 = vmul.f32 %v1939, 0.044715
    %v1953 = vmul.f32 %v1943, 0.044715
    %v1954 = vmul.f32 %v1945, 0.044715
    %v1955 = vmul.f32 %v1951, %v1937
    %v1956 = vmul.f32 %v1952, %v1939
    %v1957 = vmul.f32 %v1953, %v1943
    %v1958 = vmul.f32 %v1954, %v1945
    %v1959 = vmul.f32 %v1955, %v1937
    %v1960 = vmul.f32 %v1956, %v1939
    %v1961 = vmul.f32 %v1957, %v1943
    %v1962 = vmul.f32 %v1958, %v1945
    %v1963 = vadd.f32 %v1937, %v1959
    %v1964 = vadd.f32 %v1939, %v1960
    %v1965 = vadd.f32 %v1943, %v1961
    %v1966 = vadd.f32 %v1945, %v1962
    %v1967 = vmul.f32 %v1963, 0.7978846
    %v1968 = vmul.f32 %v1964, 0.7978846
    %v1969 = vmul.f32 %v1965, 0.7978846
    %v1970 = vmul.f32 %v1966, 0.7978846
    %v1971 = vtanh.pop %v1967
    %v1972 = vtanh.pop %v1968
    %v1973 = vtanh.pop %v1969
    %v1974 = vtanh.pop %v1970
    %v1975 = vadd.f32 %v1971, 1.0
    %v1976 = vadd.f32 %v1972, 1.0
    %v1977 = vadd.f32 %v1973, 1.0
    %v1978 = vadd.f32 %v1974, 1.0
    %v1979 = vmul.f32 %v1947, %v1975
    %v1980 = vmul.f32 %v1948, %v1976
    %v1981 = vmul.f32 %v1949, %v1977
    %v1982 = vmul.f32 %v1950, %v1978
    %v1983 = vld [vmem:[%s9] sm:$0xff]
    %v1984 = vld [vmem:[%s9 + $0x8] sm:$0xff]
    %v1985 = vld [vmem:[%s9 + $0x10] sm:$0xff]
    %v1986 = vld [vmem:[%s9 + $0x18] sm:$0xff]
    %v1987 = vld [vmem:[%s9 + $0x20] sm:$0xff]
    %v1988 = vld [vmem:[%s9 + $0x28] sm:$0xff]
    %v1989 = vld [vmem:[%s9 + $0x30] sm:$0xff]
    %v1990 = vld [vmem:[%s9 + $0x38] sm:$0xff]
    %v1991 = vld [vmem:[%s9 + $0x40] sm:$0xff]
    %v1992 = vld [vmem:[%s9 + $0x48] sm:$0xff]
    %v1993 = vld [vmem:[%s9 + $0x50] sm:$0xff]
    %v1994 = vld [vmem:[%s9 + $0x58] sm:$0xff]
    %v1995 = vld [vmem:[%s9 + $0x60] sm:$0xff]
    %v1996 = vld [vmem:[%s9 + $0x68] sm:$0xff]
    %v1997 = vld [vmem:[%s9 + $0x70] sm:$0xff]
    %v1998 = vld [vmem:[%s9 + $0x78] sm:$0xff]
    %v1999 = vld [vmem:[%s9 + $0x80] sm:$0xff]
    %v2000 = vld [vmem:[%s9 + $0x88] sm:$0xff]
    %v2001 = vld [vmem:[%s9 + $0x90] sm:$0xff]
    %v2002 = vld [vmem:[%s9 + $0x98] sm:$0xff]
    %v2003 = vld [vmem:[%s9 + $0xa0] sm:$0xff]
    %v2004 = vld [vmem:[%s9 + $0xa8] sm:$0xff]
    %v2005 = vld [vmem:[%s9 + $0xb0] sm:$0xff]
    %v2006 = vld [vmem:[%s9 + $0xb8] sm:$0xff]
    %v2007 = vld [vmem:[%s9 + $0xc0] sm:$0xff]
    %v2008 = vld [vmem:[%s9 + $0xc8] sm:$0xff]
    %v2009 = vld [vmem:[%s9 + $0xd0] sm:$0xff]
    %v2010 = vld [vmem:[%s9 + $0xd8] sm:$0xff]
    %v2011 = vld [vmem:[%s9 + $0xe0] sm:$0xff]
    %v2012 = vld [vmem:[%s9 + $0xe8] sm:$0xff]
    %v2013 = vld [vmem:[%s9 + $0xf0] sm:$0xff]
    %v2014 = vld [vmem:[%s9 + $0xf8] sm:$0xff]
    %2015 = vmatprep.subr.mxu0 0.0
    %2016 = vmatpush1.msra.mxu0 %v1983
    %2017 = vmatprep.subr.mxu0 0.0
    %2018 = vmatpush1.msra.mxu0 %v1984
    %2019 = vmatprep.subr.mxu0 0.0
    %2020 = vmatpush1.msra.mxu0 %v1985
    %2021 = vmatprep.subr.mxu0 0.0
    %2022 = vmatpush1.msra.mxu0 %v1986
    %2023 = vmatprep.subr.mxu0 0.0
    %2024 = vmatpush1.msra.mxu0 %v1987
    %2025 = vmatprep.subr.mxu0 0.0
    %2026 = vmatpush1.msra.mxu0 %v1988
    %2027 = vmatprep.subr.mxu0 0.0
    %2028 = vmatpush1.msra.mxu0 %v1989
    %2029 = vmatprep.subr.mxu0 0.0
    %2030 = vmatpush1.msra.mxu0 %v1990
    %2031 = vmatprep.subr.mxu0 0.0
    %2032 = vmatpush1.msra.mxu0 %v1991
    %2033 = vmatprep.subr.mxu0 0.0
    %2034 = vmatpush1.msra.mxu0 %v1992
    %2035 = vmatprep.subr.mxu0 0.0
    %2036 = vmatpush1.msra.mxu0 %v1993
    %2037 = vmatprep.subr.mxu0 0.0
    %2038 = vmatpush1.msra.mxu0 %v1994
    %2039 = vmatprep.subr.mxu0 0.0
    %2040 = vmatpush1.msra.mxu0 %v1995
    %2041 = vmatprep.subr.mxu0 0.0
    %2042 = vmatpush1.msra.mxu0 %v1996
    %2043 = vmatprep.subr.mxu0 0.0
    %2044 = vmatpush1.msra.mxu0 %v1997
    %2045 = vmatprep.subr.mxu0 0.0
    %2046 = vmatpush1.msra.mxu0 %v1998
    %2047 = vmatprep.subr.mxu0 0.0
    %2048 = vmatpush1.msra.mxu0 %v1999
    %2049 = vmatprep.subr.mxu0 0.0
    %2050 = vmatpush1.msra.mxu0 %v2000
    %2051 = vmatprep.subr.mxu0 0.0
    %2052 = vmatpush1.msra.mxu0 %v2001
    %2053 = vmatprep.subr.mxu0 0.0
    %2054 = vmatpush1.msra.mxu0 %v2002
    %2055 = vmatprep.subr.mxu0 0.0
    %2056 = vmatpush1.msra.mxu0 %v2003
    %2057 = vmatprep.subr.mxu0 0.0
    %2058 = vmatpush1.msra.mxu0 %v2004
    %2059 = vmatprep.subr.mxu0 0.0
    %2060 = vmatpush1.msra.mxu0 %v2005
    %2061 = vmatprep.subr.mxu0 0.0
    %2062 = vmatpush1.msra.mxu0 %v2006
    %2063 = vmatprep.subr.mxu0 0.0
    %2064 = vmatpush1.msra.mxu0 %v2007
    %2065 = vmatprep.subr.mxu0 0.0
    %2066 = vmatpush1.msra.mxu0 %v2008
    %2067 = vmatprep.subr.mxu0 0.0
    %2068 = vmatpush1.msra.mxu0 %v2009
    %2069 = vmatprep.subr.mxu0 0.0
    %2070 = vmatpush1.msra.mxu0 %v2010
    %2071 = vmatprep.subr.mxu0 0.0
    %2072 = vmatpush1.msra.mxu0 %v2011
    %2073 = vmatprep.subr.mxu0 0.0
    %2074 = vmatpush1.msra.mxu0 %v2012
    %2075 = vmatprep.subr.mxu0 0.0
    %2076 = vmatpush1.msra.mxu0 %v2013
    %2077 = vmatprep.subr.mxu0 0.0
    %2078 = vmatpush1.msra.mxu0 %v2014
    %2079 = vmatprep.mubr.f32.mxu0 %v1980
    %2080 = vmatmul.mubr.f32.gmra.mrb[0].mxu0 %v1979
    %v2081 = vpop.f32.mrb[0].mxu0
    %v2082 = vadd.f32 0.0, %v2081
    %v2083 = vpop.f32.mrb[0].mxu0
    %2084 = vmatprep.mubr.f32.mxu0 %v1982
    %2085 = vmatmul.mubr.f32.gmra.mrb[0].mxu0 %v1981
    %v2086 = vpop.f32.mrb[0].mxu0
    %v2087 = vadd.f32 0.0, %v2086
    %v2088 = vpop.f32.mrb[0].mxu0
    %2089 = vdwg.mxu0
    %v2090 = vadd.f32 %v1840, %v2082
    %v2091 = vadd.f32 %v1841, %v2087
    %v2092 = vld [vmem:[#allocation10] sm:$0x1]
    %v2094 = vlaneseq
    %v2095 = vshrl.u32 %v2094, 7
    %v2096 = vsub.s32 0, %v2095
    %v2097 = vrot.slane %v2092, %v2096
    %v2099 = vadd.f32 %v2090, %v2097
    %v2100 = vadd.f32 %v2091, %v2097
    %2101 = vst.msk [vmem:[#allocation11] sm:$0xff] %vm110, %v2099
    %2102 = vst.msk [vmem:[#allocation11 + $0x8] sm:$0xff] %vm110, %v2100
    // Predicated region
    $region78: #{tpu_custom_call.1} parent=1 // pred_check
      _
    $region79: #{tpu_custom_call.1} parent=1 // pred_check_branch
      %2104 = sbr.rel (0) target = $region81
    $region80: #{tpu_custom_call.1} parent=1 // pred_region
      %s2106 = ssub.s32 256, 256
      %2107 = vsyncadd [#allocation4], %s2106
      %s2108 = sshll.u32 [#allocation11], 4
      %s2109 = int_to_ptr.vmem [resolvable:$true] %s2108
      %2114 = dma.vmem_to_hbm [thread:$0]  %s2109, 256, %s14, [#allocation4], 128, 128, 8
    $region81: #{tpu_custom_call.1} parent=1 // pred_fallthru
      _
    // Predicated region
    $region82: #{tpu_custom_call.1} parent=1 // pred_check
      _
    $region83: #{tpu_custom_call.1} parent=1 // pred_check_branch
      %2116 = sbr.rel (0) target = $region85
    $region84: #{tpu_custom_call.1} parent=1 // pred_region
      %2117 = dma.done [#allocation4], 256
    $region85: #{tpu_custom_call.1} parent=1 // pred_fallthru
      _
    %2118 = vsyncpa [#allocation3], 1
    %2119 = vsyncpa [#allocation6], 1
    %2120 = vsyncpa [#allocation9], 1
    %2121 = vsyncpa [#allocation4], 1

</llo_original>
